<compile_context>
chip_gen: v7x
topology: tpu7x:2x2x1
jax: 0.10.0
libtpu: 0.0.40
codegen_flags: <defaults>
</compile_context>

<pallas_src>
import jax
import jax.numpy as jnp
from jax import lax
from jax.experimental import pallas as pl
from jax.experimental.pallas import tpu as pltpu

NEG_SLOPE = 0.01                 # nn.LeakyReLU default negative slope
BN_EPS = 1e-5                    # nn.BatchNorm2d default eps
COMPUTE_DTYPE = jnp.bfloat16     # MXU input dtype; accumulation is always f32


def _round_up(x, m):
    return (x + m - 1) // m * m


def _vmem_limit_bytes():
    cap = 64 * 1024 * 1024       # conservative fallback (v7x-sized)
    try:
        info = pltpu.get_tpu_info()
        cap = int(getattr(info, "vmem_capacity_bytes", cap))
    except Exception:
        pass
    return int(cap * 0.8)        # ~102 MiB on v5e/v6e (128 MiB), ~51 MiB on v7x (64 MiB)


VMEM_LIMIT = _vmem_limit_bytes()


# ---------------------------------------------------------------------------
# Kernel 1: bilinear x2 upsample (align_corners=True) fused with F.pad + halo
# ---------------------------------------------------------------------------

def _upsample_kernel(x_ref, ah_ref, aw_ref, o_ref):
    # x_ref : (1, H1, W1, cb)   channels-last input block
    # ah_ref: (Hp, H1)          row-interp matrix, pad rows already zero
    # aw_ref: (Wq, W1)          col-interp matrix, pad cols already zero
    # o_ref : (1, Hp, Wq, cb)   upsampled block placed onto the zero-padded raster
    H1, W1, cb = x_ref.shape[1], x_ref.shape[2], x_ref.shape[3]
    Hp = ah_ref.shape[0]
    Wq = aw_ref.shape[0]

    xv = x_ref[0].astype(jnp.float32)                                   # (H1, W1, cb)
    x2d = xv.reshape(H1, W1 * cb)
    r = jnp.dot(ah_ref[...], x2d, preferred_element_type=jnp.float32)   # (Hp, W1*cb)
    r3 = r.reshape(Hp, W1, cb)
    aw_b = jnp.broadcast_to(aw_ref[...][None, :, :], (Hp, Wq, W1))
    out = lax.dot_general(                                              # (Hp, Wq, cb)
        aw_b, r3,
        dimension_numbers=(((2,), (1,)), ((0,), (0,))),
        preferred_element_type=jnp.float32)
    o_ref[0] = out.astype(o_ref.dtype)


def _interp_matrix(n_in, n_out):
    """1-D linear-interp matrix matching torch Upsample(bilinear, align_corners=True)."""
    if n_in == 1:
        return jnp.ones((n_out, 1), jnp.float32)
    src = jnp.arange(n_out, dtype=jnp.float32) * (n_in - 1) / (n_out - 1)
    lo = jnp.clip(jnp.floor(src).astype(jnp.int32), 0, n_in - 2)
    frac = src - lo.astype(jnp.float32)
    rows = jnp.arange(n_out)
    m = jnp.zeros((n_out, n_in), jnp.float32)
    m = m.at[rows, lo].set(1.0 - frac)
    m = m.at[rows, lo + 1].add(frac)
    return m


def bilinear_up_pad(x1_nchw, H, W, Hp, Wq, out_dtype):
    """x2 bilinear upsample of x1 fused with the F.pad centering AND the conv's 1-px
    halo: the output lives directly on the zero-padded (Hp, Wq) channels-last raster."""
    N, C1, H1, W1 = x1_nchw.shape
    oy = (H - 2 * H1) // 2          # F.pad top offset  (diffY // 2)
    ox = (W - 2 * W1) // 2          # F.pad left offset (diffX // 2)

    ah = _interp_matrix(H1, 2 * H1)                                  # (2H1, H1)
    aw = _interp_matrix(W1, 2 * W1)                                  # (2W1, W1)
    ah_pad = jnp.zeros((Hp, H1), jnp.float32).at[1 + oy:1 + oy + 2 * H1, :].set(ah)
    aw_pad = jnp.zeros((Wq, W1), jnp.float32).at[1 + ox:1 + ox + 2 * W1, :].set(aw)

    x = jnp.transpose(x1_nchw, (0, 2, 3, 1)).astype(jnp.float32)     # (N, H1, W1, C1)
    cb = 128 if C1 % 128 == 0 else C1                                # channel parallel axis

    out = pl.pallas_call(
        _upsample_kernel,
        grid=(N, C1 // cb),
        in_specs=[
            pl.BlockSpec((1, H1, W1, cb), lambda n, c: (n, 0, 0, c)),
            pl.BlockSpec((Hp, H1), lambda n, c: (0, 0)),
            pl.BlockSpec((Wq, W1), lambda n, c: (0, 0)),
        ],
        out_specs=pl.BlockSpec((1, Hp, Wq, cb), lambda n, c: (n, 0, 0, c)),
        out_shape=jax.ShapeDtypeStruct((N, Hp, Wq, C1), out_dtype),
        compiler_params=pltpu.CompilerParams(
            dimension_semantics=("parallel", "parallel"),
            vmem_limit_bytes=VMEM_LIMIT),
    )(x, ah_pad, aw_pad)
    return out.reshape(N, Hp * Wq, C1)


# ---------------------------------------------------------------------------
# Kernel 2: fused 3x3 conv (roll-based implicit im2col) + folded BN + LeakyReLU
# ---------------------------------------------------------------------------

def _make_conv_kernel(Hp, Wq, n_inputs, nk):
    L = Hp * Wq

    def kernel(*refs):
        x_refs = refs[:n_inputs]                    # each (1, L, tci_i)
        w_refs = refs[n_inputs:2 * n_inputs]        # each (9, tci_i, tco)
        scale_ref, bias_ref, mask_ref, o_ref = refs[2 * n_inputs:]

        def tap(t):
            v = None
            for x_ref, w_ref in zip(x_refs, w_refs):
                d = jnp.dot(x_ref[0], w_ref[t], preferred_element_type=jnp.float32)
                v = d if v is None else v + d
            return v

        # out[u*Wq+v] = sum_t T_t[(u+dy)*Wq + (v+dx)], with the (+1,+1) shift folded in
        # so the valid image lands at rows/cols [1..H]x[1..W] of the padded raster.
        acc = None
        for t in range(9):
            dy, dx = t // 3 - 1, t % 3 - 1
            shift = (-(dy * Wq + dx)) % L
            tv = tap(t)
            if shift:
                tv = pltpu.roll(tv, shift, 0)       # XLU sublane rotate; overlaps MXU
            acc = tv if acc is None else acc + tv

        def epilogue(a):
            y = a * scale_ref[...] + bias_ref[...]
            y = jnp.where(y >= 0, y, NEG_SLOPE * y)
            return (y * mask_ref[...]).astype(o_ref.dtype)   # zero ring outside image

        if nk == 1:
            o_ref[0] = epilogue(acc)
        else:
            k = pl.program_id(2)

            @pl.when(k == 0)
            def _():
                o_ref[0] = acc                       # accumulate directly in o_ref (f32)

            @pl.when(k > 0)
            def _():
                o_ref[0] = o_ref[0] + acc

            @pl.when(k == nk - 1)
            def _():
                o_ref[0] = epilogue(o_ref[0])

    return kernel


def _conv_plan(L, cis, co_pad, act_bytes, out_bytes, limit):
    """Pick (Cout tile, Cin split) under the generation-aware VMEM budget; prefer nk=1."""
    tco = co_pad if co_pad <= 256 else (256 if co_pad % 256 == 0 else 128)
    budget = max(limit - (4 << 20), 8 << 20)

    def need(nk):
        acts = sum(2 * L * (ci // nk) * act_bytes for ci in cis)
        wts = sum(2 * 9 * (ci // nk) * tco * act_bytes for ci in cis)
        outb = 2 * L * tco * (4 if nk > 1 else max(out_bytes, 4))
        return acts + wts + outb + L * 4 + (1 << 20)

    nk = 1
    while need(nk) > budget:
        nxt = nk * 2
        if all(ci % nxt == 0 and (ci // nxt) % 128 == 0 for ci in cis):
            nk = nxt
        else:
            break   # TODO(synk): fall back to spatial row-strip tiling here
    return tco, nk


def conv3x3_bn_lrelu(inputs, weights, bn_scale, bn_bias, H, W, Hp, Wq, out_dtype):
    """Fused 3x3 conv (stride 1, pad 1, no bias) + folded BN + LeakyReLU.

    `inputs`  : list of (N, L, Ci_i) activations on the zero-padded raster; their
                channels are virtually concatenated (conv1 fuses torch.cat as a K-split).
    `weights` : list of (3, 3, Ci_i, Co) HWIO weights.
    Returns (N, L, Co_pad) on the same padded raster with the valid image at
    rows/cols [1..H]x[1..W] and an exact zero ring, ready to feed the next conv.
    """
    N = inputs[0].shape[0]
    L = Hp * Wq
    n_in = len(inputs)
    co = weights[0].shape[-1]
    co_pad = _round_up(co, 128)          # lane-dense output stores / full MXU N

    w_list = []
    for w in weights:
        ci = w.shape[2]
        if co_pad > co:
            w = jnp.pad(w, ((0, 0), (0, 0), (0, 0), (0, co_pad - co)))
        w_list.append(w.reshape(9, ci, co_pad).astype(COMPUTE_DTYPE))
    scale = jnp.pad(bn_scale, (0, co_pad - co)).reshape(1, co_pad).astype(jnp.float32)
    bias = jnp.pad(bn_bias, (0, co_pad - co)).reshape(1, co_pad).astype(jnp.float32)

    # Valid-region mask (rows 1..H, cols 1..W of the padded raster).
    uu = jnp.arange(Hp, dtype=jnp.int32)[:, None]
    vv = jnp.arange(Wq, dtype=jnp.int32)[None, :]
    mask = (((uu >= 1) & (uu <= H)) & ((vv >= 1) & (vv <= W)))
    mask = mask.astype(jnp.float32).reshape(L, 1)

    cis = [w.shape[1] for w in w_list]
    act_bytes = max(jnp.dtype(x.dtype).itemsize for x in inputs)
    tco, nk = _conv_plan(L, cis, co_pad, act_bytes,
                         jnp.dtype(out_dtype).itemsize, VMEM_LIMIT)
    if nk > 1:
        out_dtype = jnp.float32          # K-partials accumulate in the f32 output block

    in_specs = []
    for ci in cis:
        in_specs.append(pl.BlockSpec((1, L, ci // nk), lambda n, c, k: (n, 0, k)))
    for ci in cis:
        in_specs.append(pl.BlockSpec((9, ci // nk, tco), lambda n, c, k: (0, k, c)))
    in_specs.append(pl.BlockSpec((1, tco), lambda n, c, k: (0, c)))      # scale
    in_specs.append(pl.BlockSpec((1, tco), lambda n, c, k: (0, c)))      # bias
    in_specs.append(pl.BlockSpec((L, 1), lambda n, c, k: (0, 0)))        # mask

    out = pl.pallas_call(
        _make_conv_kernel(Hp, Wq, n_in, nk),
        grid=(N, co_pad // tco, nk),
        in_specs=in_specs,
        out_specs=pl.BlockSpec((1, L, tco), lambda n, c, k: (n, 0, c)),
        out_shape=jax.ShapeDtypeStruct((N, L, co_pad), out_dtype),
        compiler_params=pltpu.CompilerParams(
            dimension_semantics=("parallel", "parallel", "arbitrary"),
            vmem_limit_bytes=VMEM_LIMIT),
    )(*inputs, *w_list, scale, bias, mask)
    return out


# ---------------------------------------------------------------------------
# Up.forward
# ---------------------------------------------------------------------------

def up_forward(x1_nchw, x2_nchw, params):
    """Pallas implementation of Up.forward (NCHW in / NCHW out, like PyTorch)."""
    N, C2, H, W = x2_nchw.shape
    Hp = H + 2                      # conv halo rows
    Wq = _round_up(W + 2, 8)        # halo cols, rounded so raster rows are sublane-aligned
    L = Hp * Wq

    # x2 -> zero-padded channels-last raster (one fused XLA transpose+pad+cast pass).
    x2 = jnp.transpose(x2_nchw, (0, 2, 3, 1)).astype(COMPUTE_DTYPE)
    x2p = jnp.pad(x2, ((0, 0), (1, Hp - H - 1), (1, Wq - W - 1), (0, 0))).reshape(N, L, C2)

    # Upsample + F.pad + halo, fused; emitted in compute dtype.
    x1u = bilinear_up_pad(x1_nchw, H, W, Hp, Wq, COMPUTE_DTYPE)          # (N, L, C1)

    # conv1: torch.cat([x2, x1u], dim=1) fused as a K-split (never materialized).
    w1 = params["w1"]
    w1a = w1[:, :, :C2, :]
    w1b = w1[:, :, C2:, :]
    y = conv3x3_bn_lrelu([x2p, x1u], [w1a, w1b], params["s1"], params["b1"],
                         H, W, Hp, Wq, out_dtype=COMPUTE_DTYPE)

    # conv2 consumes conv1's padded-raster output directly (zero ring already in place).
    w2 = params["w2"]
    ci2 = y.shape[-1]
    if w2.shape[2] < ci2:            # conv1 channels were padded to a 128 multiple
        w2 = jnp.pad(w2, ((0, 0), (0, 0), (0, ci2 - w2.shape[2]), (0, 0)))
    y = conv3x3_bn_lrelu([y], [w2], params["s2"], params["b2"],
                         H, W, Hp, Wq, out_dtype=jnp.float32)

    co = params["w2"].shape[-1]
    out = y.reshape(N, Hp, Wq, -1)[:, 1:H + 1, 1:W + 1, :co]
    return jnp.transpose(out, (0, 3, 1, 2)).astype(jnp.float32)


# ---------------------------------------------------------------------------
# Deterministic parameter init (synthetic; shapes from Up.__init__)
# ---------------------------------------------------------------------------

def init_params(key, in_channels, out_channels):
    ks = jax.random.split(key, 10)

    def bn_fold(gamma, beta, mean, var):
        scale = gamma / jnp.sqrt(var + BN_EPS)
        return scale, beta - mean * scale

    w1 = 0.1 * jax.random.normal(ks[0], (3, 3, in_channels, out_channels), jnp.float32)
    g1 = 1.0 + 0.1 * jax.random.normal(ks[1], (out_channels,), jnp.float32)
    be1 = 0.1 * jax.random.normal(ks[2], (out_channels,), jnp.float32)
    m1 = 0.05 * jax.random.normal(ks[3], (out_channels,), jnp.float32)
    v1 = 0.5 + 0.2 * jnp.abs(jax.random.normal(ks[4], (out_channels,), jnp.float32))
    s1, b1 = bn_fold(g1, be1, m1, v1)

    w2 = 0.1 * jax.random.normal(ks[5], (3, 3, out_channels, out_channels), jnp.float32)
    g2 = 1.0 + 0.1 * jax.random.normal(ks[6], (out_channels,), jnp.float32)
    be2 = 0.1 * jax.random.normal(ks[7], (out_channels,), jnp.float32)
    m2 = 0.05 * jax.random.normal(ks[8], (out_channels,), jnp.float32)
    v2 = 0.5 + 0.2 * jnp.abs(jax.random.normal(ks[9], (out_channels,), jnp.float32))
    s2, b2 = bn_fold(g2, be2, m2, v2)

    return {"w1": w1, "s1": s1, "b1": b1, "w2": w2, "s2": s2, "b2": b2}


# ---------------------------------------------------------------------------
# Pure-JAX f32 reference (same math, no Pallas)
# ---------------------------------------------------------------------------

def ref_forward(x1_nchw, x2_nchw, params):
    x1 = jnp.transpose(x1_nchw, (0, 2, 3, 1)).astype(jnp.float32)
    x2 = jnp.transpose(x2_nchw, (0, 2, 3, 1)).astype(jnp.float32)
    N, H1, W1, C1 = x1.shape
    A_h = _interp_matrix(H1, 2 * H1)
    A_w = _interp_matrix(W1, 2 * W1)
    x1 = jnp.einsum('ph,nhwc,qw->npqc', A_h, x1, A_w)
    dY = x2.shape[1] - x1.shape[1]
    dX = x2.shape[2] - x1.shape[2]
    x1 = jnp.pad(x1, ((0, 0), (dY // 2, dY - dY // 2),
                      (dX // 2, dX - dX // 2), (0, 0)))
    x = jnp.concatenate([x2, x1], axis=-1)

    def block(z, w, s, b):
        y = lax.conv_general_dilated(z, w, (1, 1), 'SAME',
                                     dimension_numbers=('NHWC', 'HWIO', 'NHWC'))
        y = y * s + b
        return jnp.where(y >= 0, y, NEG_SLOPE * y)

    y = block(x, params["w1"], params["s1"], params["b1"])
    y = block(y, params["w2"], params["s2"], params["b2"])
    return jnp.transpose(y, (0, 3, 1, 2))


if __name__ == "__main__":
    key = jax.random.PRNGKey(0)
    k_x1, k_x2, k_p = jax.random.split(key, 3)

    in_channels, out_channels = 8, 4          # Up(in_channels=8, out_channels=4)
    N, H2, W2 = 2, 16, 16                     # x2 spatial size
    H1, W1 = H2 // 2, W2 // 2                 # x1 spatial size (gets upsampled x2)

    x1 = jax.random.normal(k_x1, (N, in_channels // 2, H1, W1), jnp.float32)
    x2 = jax.random.normal(k_x2, (N, in_channels // 2, H2, W2), jnp.float32)
    params = init_params(k_p, in_channels, out_channels)

    out = jax.block_until_ready(up_forward(x1, x2, params))
    assert out.shape == (N, out_channels, H2, W2), out.shape

    ref = jax.block_until_ready(ref_forward(x1, x2, params))
    err = jnp.abs(out - ref)
    max_err = float(jnp.max(err))
    mean_err = float(jnp.mean(err))
    # bf16 MXU inputs with f32 accumulation vs. a pure-f32 reference.
    assert max_err < 4e-2 and mean_err < 8e-3, (max_err, mean_err)

    print("KERNEL_OK")
</pallas_src>

<mosaic_0001>
module attributes {stable_mosaic.version = 11 : i64} {
  func.func @_upsample_kernel(%arg0: i32, %arg1: i32, %arg2: memref<1x8x8x4xf32, #tpu.memory_space<vmem>>, %arg3: memref<18x8xf32, #tpu.memory_space<vmem>>, %arg4: memref<24x8xf32, #tpu.memory_space<vmem>>, %arg5: memref<1x18x24x4xbf16, #tpu.memory_space<vmem>>) attributes {dimension_semantics = [#tpu.dimension_semantics<parallel>, #tpu.dimension_semantics<parallel>], iteration_bounds = array<i64: 2, 1>, scalar_prefetch = 0 : i64, scratch_operands = 0 : i64, tpu.core_type = #tpu.core_type<tc>, window_params = [{transform_indices = @transform_0, window_bounds = array<i64: 1, 8, 8, 4>}, {pipeline_mode = #tpu.pipeline_mode<synchronous>, transform_indices = @transform_1, window_bounds = array<i64: 18, 8>}, {pipeline_mode = #tpu.pipeline_mode<synchronous>, transform_indices = @transform_2, window_bounds = array<i64: 24, 8>}, {transform_indices = @transform_3, window_bounds = array<i64: 1, 18, 24, 4>}]} {
    %c0 = arith.constant 0 : index
    %c0_0 = arith.constant 0 : index
    %c0_1 = arith.constant 0 : index
    %c0_2 = arith.constant 0 : index
    %0 = vector.load %arg2[%c0, %c0_0, %c0_1, %c0_2] : memref<1x8x8x4xf32, #tpu.memory_space<vmem>>, vector<1x8x8x4xf32>
    %1 = vector.shape_cast %0 : vector<1x8x8x4xf32> to vector<8x8x4xf32>
    %2 = vector.shape_cast %1 : vector<8x8x4xf32> to vector<8x32xf32>
    %c0_3 = arith.constant 0 : index
    %c0_4 = arith.constant 0 : index
    %3 = vector.load %arg3[%c0_3, %c0_4] : memref<18x8xf32, #tpu.memory_space<vmem>>, vector<18x8xf32>
    %cst = arith.constant dense<0.000000e+00> : vector<18x32xf32>
    %4 = tpu.matmul %3, %2, %cst {dimension_numbers = #tpu.dot_dimension_numbers<[1], [0], [0], [1], [0, 0, 1, 1], [], []>} : vector<18x8xf32>, vector<8x32xf32>, vector<18x32xf32> -> vector<18x32xf32>
    %5 = vector.shape_cast %4 : vector<18x32xf32> to vector<18x8x4xf32>
    %c0_5 = arith.constant 0 : index
    %c0_6 = arith.constant 0 : index
    %6 = vector.load %arg4[%c0_5, %c0_6] : memref<24x8xf32, #tpu.memory_space<vmem>>, vector<24x8xf32>
    %7 = vector.shape_cast %6 : vector<24x8xf32> to vector<1x24x8xf32>
    %8 = vector.shape_cast %7 : vector<1x24x8xf32> to vector<1x24x8xf32>
    %9 = vector.broadcast %8 : vector<1x24x8xf32> to vector<18x24x8xf32>
    %cst_7 = arith.constant dense<0.000000e+00> : vector<18x24x4xf32>
    %10 = tpu.matmul %9, %5, %cst_7 {dimension_numbers = #tpu.dot_dimension_numbers<[2], [1], [1], [2], [0, 0, 0, 1, 1, 2], [0], [0]>} : vector<18x24x8xf32>, vector<18x8x4xf32>, vector<18x24x4xf32> -> vector<18x24x4xf32>
    %11 = arith.truncf %10 : vector<18x24x4xf32> to vector<18x24x4xbf16>
    %c0_8 = arith.constant 0 : index
    %c0_9 = arith.constant 0 : index
    %c0_10 = arith.constant 0 : index
    %c0_11 = arith.constant 0 : index
    %12 = vector.load %arg5[%c0_8, %c0_9, %c0_10, %c0_11] : memref<1x18x24x4xbf16, #tpu.memory_space<vmem>>, vector<1x18x24x4xbf16>
    %13 = vector.shape_cast %12 : vector<1x18x24x4xbf16> to vector<18x24x4xbf16>
    %14 = vector.shape_cast %11 : vector<18x24x4xbf16> to vector<1x18x24x4xbf16>
    tpu.vector_store %arg5[%c0_8, %c0_9, %c0_10, %c0_11], %14 {strides = array<i32>} : memref<1x18x24x4xbf16, #tpu.memory_space<vmem>>, vector<1x18x24x4xbf16>,
    return
  }
  func.func @transform_0(%arg0: i32, %arg1: i32) -> (i32, i32, i32, i32) {
    %c0_i32 = arith.constant 0 : i32
    %c0_i32_0 = arith.constant 0 : i32
    %c0_i32_1 = arith.constant 0 : i32
    return %arg0, %c0_i32, %c0_i32_0, %arg1 : i32, i32, i32, i32
  }
  func.func @transform_1(%arg0: i32, %arg1: i32) -> (i32, i32) {
    %c0_i32 = arith.constant 0 : i32
    %c0_i32_0 = arith.constant 0 : i32
    %c0_i32_1 = arith.constant 0 : i32
    return %c0_i32, %c0_i32_0 : i32, i32
  }
  func.func @transform_2(%arg0: i32, %arg1: i32) -> (i32, i32) {
    %c0_i32 = arith.constant 0 : i32
    %c0_i32_0 = arith.constant 0 : i32
    %c0_i32_1 = arith.constant 0 : i32
    return %c0_i32, %c0_i32_0 : i32, i32
  }
  func.func @transform_3(%arg0: i32, %arg1: i32) -> (i32, i32, i32, i32) {
    %c0_i32 = arith.constant 0 : i32
    %c0_i32_0 = arith.constant 0 : i32
    %c0_i32_1 = arith.constant 0 : i32
    return %arg0, %c0_i32, %c0_i32_0, %arg1 : i32, i32, i32, i32
  }
}

</mosaic_0001>

<llo_original>
// kernel: tpu_custom_call.1
$region0: #{tpu_custom_call.1}
  #allocation0 [shape = 'u32[]', space=smem, size = 0x4, offset = 0x4, fixed_abs, tag = 'smem constant byte address 0x4 - core index']
  #allocation1 [shape = 'u32[144,128]{1,0:T(1,128)}', space=vmem, size = 0x12000, scoped, tag = 'internal scratch']
  %s0 = inlined_call_operand.vmem [shape: f32[2,8,8,4], index: 0, kind: input, shape index: {}]
  %s1 = inlined_call_operand.vmem [shape: f32[18,8], index: 1, kind: input, shape index: {}]
  %s2 = inlined_call_operand.vmem [shape: f32[24,8], index: 2, kind: input, shape index: {}]
  %s3 = inlined_call_operand.vmem [shape: bf16[2,18,24,4], index: 3, kind: output, shape index: {}]
  %s4 = sld [smem:[#allocation0]]
  $region45: #{tpu_custom_call.1} parent=0
    _
  %s6 = ssub.s32 1, %s4
  %s7 = scalar_select 0, %s6, %s4
  loop: start=0, step=1, limit=4
  $region2: #{tpu_custom_call.1} parent=0 // loop_pre_header
    _
  $region3: #{tpu_custom_call.1} parent=0 // loop_header
    %s9 = sphi 0, %s13
    %p10 = scmp.ge.s32.totalorder %s9, 4
    %s16 = sphi 0, %s28
    %s17 = sphi 0, %s24
    %s18 = sphi 0, %s16
    %s19 = sphi 0, %s17
    %s20 = sphi 0, %s18
    %s21 = sphi 0, %s19
    %s33 = sphi 0, %s35
    %s36 = sphi 0, %s33
    %s37 = sphi 0, %s36
    %s53 = sphi 0, %s37
    %s57 = sphi 0, %s57
    %s59 = sphi 0, %s57
    %s60 = sphi 0, %s59
    %s74 = sphi 0, %s60
    %s78 = sphi 0, %s78
    %s80 = sphi 0, %s78
    %s81 = sphi 0, %s80
    %s95 = sphi 0, %s81
    %s103 = sphi 0, %s105
    %s106 = sphi 0, %s103
    %s107 = sphi 0, %s106
    %s123 = sphi 0, %s107
  $region4: #{tpu_custom_call.1} parent=0 // loop_header_branch
    %12 = sbr.rel (%p10) target = $region8
  $region5: #{tpu_custom_call.1} parent=0 // loop_body
    %s14 = ssub.s32 %s9, 1
    %s15 = ssub.s32 %s9, 2
    %s22 = sadd.s32 1, %s17
    %p23 = scmp.ge.s32.totalorder %s22, 1
    %s24 = scalar_select %p23, 0, %s22
    %s25 = sadd.s32 1, %s16
    %s26 = scalar_select %p23, %s25, %s16
    %p27 = scmp.ge.s32.totalorder %s26, 2
    %s28 = scalar_select %p27, 0, %s26
    %s29 = ssub.s32 %s16, %s28
    %s30 = ssub.s32 %s17, %s24
    %s31 = sor.u32 %s29, %s30
    %p32 = scmp.eq.s32.totalorder %s31, 0
    %s34 = sadd.s32 %s33, 1
    %s35 = scalar_select %p32, %s33, %s34
    %p38 = pneg %p32
    %p39 = scmp.eq.s32.totalorder %s9, 1
    %p40 = por %p38, %p39
    %p41 = scmp.ne.s32.totalorder %s33, %s36
    %p42 = scmp.eq.s32.totalorder %s9, 0
    %p43 = por %p41, %p42
    %p44 = scmp.ne.s32.totalorder %s33, %s36
    %p45 = scmp.eq.s32.totalorder %s14, 1
    %p46 = por %p44, %p45
    %p47 = scmp.ne.s32.totalorder %s36, %s37
    %p48 = scmp.eq.s32.totalorder %s14, 0
    %p49 = por %p47, %p48
    %p50 = scmp.ne.s32.totalorder %s36, %s37
    %p51 = scmp.eq.s32.totalorder %s15, 1
    %p52 = por %p50, %p51
    %p54 = scmp.ne.s32.totalorder %s37, %s53
    %p55 = scmp.eq.s32.totalorder %s15, 0
    %p56 = por %p54, %p55
    %s58 = sadd.s32 %s57, 1
    %p61 = scmp.eq.s32.totalorder %s9, 1
    %p62 = scmp.ne.s32.totalorder %s57, %s59
    %p63 = scmp.eq.s32.totalorder %s9, 0
    %p64 = por %p62, %p63
    %p65 = scmp.ne.s32.totalorder %s57, %s59
    %p66 = scmp.eq.s32.totalorder %s14, 1
    %p67 = por %p65, %p66
    %p68 = scmp.ne.s32.totalorder %s59, %s60
    %p69 = scmp.eq.s32.totalorder %s14, 0
    %p70 = por %p68, %p69
    %p71 = scmp.ne.s32.totalorder %s59, %s60
    %p72 = scmp.eq.s32.totalorder %s15, 1
    %p73 = por %p71, %p72
    %p75 = scmp.ne.s32.totalorder %s60, %s74
    %p76 = scmp.eq.s32.totalorder %s15, 0
    %p77 = por %p75, %p76
    %s79 = sadd.s32 %s78, 1
    %p82 = scmp.eq.s32.totalorder %s9, 1
    %p83 = scmp.ne.s32.totalorder %s78, %s80
    %p84 = scmp.eq.s32.totalorder %s9, 0
    %p85 = por %p83, %p84
    %p86 = scmp.ne.s32.totalorder %s78, %s80
    %p87 = scmp.eq.s32.totalorder %s14, 1
    %p88 = por %p86, %p87
    %p89 = scmp.ne.s32.totalorder %s80, %s81
    %p90 = scmp.eq.s32.totalorder %s14, 0
    %p91 = por %p89, %p90
    %p92 = scmp.ne.s32.totalorder %s80, %s81
    %p93 = scmp.eq.s32.totalorder %s15, 1
    %p94 = por %p92, %p93
    %p96 = scmp.ne.s32.totalorder %s81, %s95
    %p97 = scmp.eq.s32.totalorder %s15, 0
    %p98 = por %p96, %p97
    %s99 = ssub.s32 %s16, %s28
    %s100 = ssub.s32 %s17, %s24
    %s101 = sor.u32 %s99, %s100
    %p102 = scmp.eq.s32.totalorder %s101, 0
    %s104 = sadd.s32 %s103, 1
    %s105 = scalar_select %p102, %s103, %s104
    %p108 = pneg %p102
    %p109 = scmp.eq.s32.totalorder %s9, 1
    %p110 = por %p108, %p109
    %p111 = scmp.ne.s32.totalorder %s103, %s106
    %p112 = scmp.eq.s32.totalorder %s9, 0
    %p113 = por %p111, %p112
    %p114 = scmp.ne.s32.totalorder %s103, %s106
    %p115 = scmp.eq.s32.totalorder %s14, 1
    %p116 = por %p114, %p115
    %p117 = scmp.ne.s32.totalorder %s106, %s107
    %p118 = scmp.eq.s32.totalorder %s14, 0
    %p119 = por %p117, %p118
    %p120 = scmp.ne.s32.totalorder %s106, %s107
    %p121 = scmp.eq.s32.totalorder %s15, 1
    %p122 = por %p120, %p121
    %p124 = scmp.ne.s32.totalorder %s107, %s123
    %p125 = scmp.eq.s32.totalorder %s15, 0
    %p126 = por %p124, %p125
    %p127 = scmp.le.s32.totalorder 1, %s9
    %p128 = scmp.lt.s32.totalorder %s9, 3
    %p129 = pnand %p127, %p128
    %p130 = pneg %p129
    // Predicated region
    $region9: #{tpu_custom_call.1} parent=5 // pred_check
      _
    $region10: #{tpu_custom_call.1} parent=5 // pred_check_branch
      %132 = sbr.rel (%p129) target = $region12
    $region11: #{tpu_custom_call.1} parent=5 // pred_region
      %s133 = ssub.s32 %s9, 1
      // Predicated region
      $region13: #{tpu_custom_call.1} parent=11 // pred_check
        %p134 = pneg %p70
      $region14: #{tpu_custom_call.1} parent=11 // pred_check_branch
        %136 = sbr.rel (%p134) target = $region16
      $region15: #{tpu_custom_call.1} parent=11 // pred_region
        _
      $region16: #{tpu_custom_call.1} parent=11 // pred_fallthru
        _
      // Predicated region
      $region17: #{tpu_custom_call.1} parent=11 // pred_check
        %p137 = pneg %p91
      $region18: #{tpu_custom_call.1} parent=11 // pred_check_branch
        %139 = sbr.rel (%p137) target = $region20
      $region19: #{tpu_custom_call.1} parent=11 // pred_region
        _
      $region20: #{tpu_custom_call.1} parent=11 // pred_fallthru
        _
    $region12: #{tpu_custom_call.1} parent=5 // pred_fallthru
      _
    %p140 = scmp.lt.s32.totalorder %s9, 2
    // Predicated region
    $region21: #{tpu_custom_call.1} parent=5 // pred_check
      %p141 = pneg %p140
    $region22: #{tpu_custom_call.1} parent=5 // pred_check_branch
      %143 = sbr.rel (%p141) target = $region24
    $region23: #{tpu_custom_call.1} parent=5 // pred_region
      // Predicated region
      $region25: #{tpu_custom_call.1} parent=23 // pred_check
        %p144 = pneg %p43
      $region26: #{tpu_custom_call.1} parent=23 // pred_check_branch
        %146 = sbr.rel (%p144) target = $region28
      $region27: #{tpu_custom_call.1} parent=23 // pred_region
        %p147 = scmp.lt.s32.totalorder %s16, 1
        %s148 = scalar_select %p147, %s16, 1
        %p149 = scmp.lt.s32.totalorder %s17, 0
        %s150 = scalar_select %p149, %s17, 0
        %s151 = smul.addr %s148, 8
        %s152 = sadd.s32 %s150, %s151
        %s153 = smul.addr %s152, 8
        %s154 = scalar_lea.vmem %s0, %s153
      $region28: #{tpu_custom_call.1} parent=23 // pred_fallthru
        _
    $region24: #{tpu_custom_call.1} parent=5 // pred_fallthru
      _
    %p155 = scmp.le.s32.totalorder 1, %s9
    %p156 = scmp.lt.s32.totalorder %s9, 3
    %p157 = pnand %p155, %p156
    %p158 = pneg %p157
    // Predicated region
    $region29: #{tpu_custom_call.1} parent=5 // pred_check
      _
    $region30: #{tpu_custom_call.1} parent=5 // pred_check_branch
      %160 = sbr.rel (%p157) target = $region32
    $region31: #{tpu_custom_call.1} parent=5 // pred_region
      %s161 = ssub.s32 %s9, 1
      %p162 = scmp.lt.s32.totalorder %s18, 1
      %s163 = scalar_select %p162, %s18, 1
      %p164 = scmp.lt.s32.totalorder %s19, 0
      %s165 = scalar_select %p164, %s19, 0
      %s166 = smul.addr %s163, 8
      %s167 = sadd.s32 %s165, %s166
      %s168 = smul.addr %s167, 8
      %s169 = scalar_lea.vmem %s0, %s168
      %p170 = pneg %p49
      %p171 = pneg %p46
      %p172 = pneg %p70
      %p173 = pneg %p67
      %p174 = pneg %p91
      %p175 = pneg %p88
      %p176 = pneg %p119
      %p177 = pneg %p116
      %p178 = scmp.lt.s32.totalorder %s18, 1
      %s179 = scalar_select %p178, %s18, 1
      %p180 = scmp.lt.s32.totalorder %s19, 0
      %s181 = scalar_select %p180, %s19, 0
      %s182 = smul.addr %s179, 54
      %s183 = sadd.s32 %s181, %s182
      %s184 = smul.addr %s183, 4
      %s185 = scalar_lea.vmem %s3, %s184
      %p186 = scmp.lt.s32.totalorder %s18, 1
      %s187 = scalar_select %p186, %s18, 1
      %p188 = scmp.lt.s32.totalorder %s19, 0
      %s189 = scalar_select %p188, %s19, 0
      %s190 = smul.addr %s187, 8
      %s191 = sadd.s32 %s189, %s190
      %s192 = smul.addr %s191, 8
      %s193 = scalar_lea.vmem %s0, %s192
      %p194 = scmp.lt.s32.totalorder %s18, 1
      %s195 = scalar_select %p194, %s18, 1
      %p196 = scmp.lt.s32.totalorder %s19, 0
      %s197 = scalar_select %p196, %s19, 0
      %s198 = smul.addr %s195, 54
      %s199 = sadd.s32 %s197, %s198
      %s200 = smul.addr %s199, 4
      %s201 = scalar_lea.vmem %s3, %s200
      %v202 = vld [vmem:[%s193] sm:$0xff]
      %v203 = vld [vmem:[%s193 + $0x8] sm:$0xff]
      %v204 = vld [vmem:[%s193 + $0x10] sm:$0xff]
      %v205 = vld [vmem:[%s193 + $0x18] sm:$0xff]
      %v206 = vld [vmem:[%s193 + $0x20] sm:$0xff]
      %v207 = vld [vmem:[%s193 + $0x28] sm:$0xff]
      %v208 = vld [vmem:[%s193 + $0x30] sm:$0xff]
      %v209 = vld [vmem:[%s193 + $0x38] sm:$0xff]
      %v210 = vcombine.low %v202, %v204
      %v211 = vcombine.high %v202, %v204
      %v213 = vunpack.c.l.s4 1983009808
      %v214 = vunpack.c.0.s8 %v213
      %v215 = vlaneseq
      %v216 = vshrl.u32 %v215, 7
      %v217 = vsub.s32 %v214, %v216
      %v218 = vrot.slane %v210, %v217
      %v220 = vunpack.c.l.s4 1983009808
      %v221 = vunpack.c.0.s8 %v220
      %v222 = vlaneseq
      %v223 = vshrl.u32 %v222, 7
      %v224 = vsub.s32 %v221, %v223
      %v225 = vrot.slane %v211, %v224
      %v226 = vcombine.low %v203, %v205
      %v227 = vcombine.high %v203, %v205
      %v229 = vunpack.c.l.s4 1983009808
      %v230 = vunpack.c.0.s8 %v229
      %v231 = vlaneseq
      %v232 = vshrl.u32 %v231, 7
      %v233 = vsub.s32 %v230, %v232
      %v234 = vrot.slane %v226, %v233
      %v236 = vunpack.c.l.s4 1983009808
      %v237 = vunpack.c.0.s8 %v236
      %v238 = vlaneseq
      %v239 = vshrl.u32 %v238, 7
      %v240 = vsub.s32 %v237, %v239
      %v241 = vrot.slane %v227, %v240
      %v242 = vcombine.low %v206, %v208
      %v243 = vcombine.high %v206, %v208
      %v245 = vunpack.c.l.s4 1983009808
      %v246 = vunpack.c.0.s8 %v245
      %v247 = vlaneseq
      %v248 = vshrl.u32 %v247, 7
      %v249 = vsub.s32 %v246, %v248
      %v250 = vrot.slane %v242, %v249
      %v252 = vunpack.c.l.s4 1983009808
      %v253 = vunpack.c.0.s8 %v252
      %v254 = vlaneseq
      %v255 = vshrl.u32 %v254, 7
      %v256 = vsub.s32 %v253, %v255
      %v257 = vrot.slane %v243, %v256
      %v258 = vcombine.low %v207, %v209
      %v259 = vcombine.high %v207, %v209
      %v261 = vunpack.c.l.s4 1983009808
      %v262 = vunpack.c.0.s8 %v261
      %v263 = vlaneseq
      %v264 = vshrl.u32 %v263, 7
      %v265 = vsub.s32 %v262, %v264
      %v266 = vrot.slane %v258, %v265
      %v268 = vunpack.c.l.s4 1983009808
      %v269 = vunpack.c.0.s8 %v268
      %v270 = vlaneseq
      %v271 = vshrl.u32 %v270, 7
      %v272 = vsub.s32 %v269, %v271
      %v273 = vrot.slane %v259, %v272
      %v274 = vcombine.low %v218, %v234
      %v275 = vcombine.high %v218, %v234
      %v277 = vunpack.c.l.s4 1934713408
      %v278 = vunpack.c.0.s8 %v277
      %v279 = vlaneseq
      %v280 = vshrl.u32 %v279, 7
      %v281 = vsub.s32 %v278, %v280
      %v282 = vrot.slane %v274, %v281
      %v284 = vunpack.c.l.s4 1934713408
      %v285 = vunpack.c.0.s8 %v284
      %v286 = vlaneseq
      %v287 = vshrl.u32 %v286, 7
      %v288 = vsub.s32 %v285, %v287
      %v289 = vrot.slane %v275, %v288
      %v290 = vcombine.low %v225, %v241
      %v291 = vcombine.high %v225, %v241
      %v293 = vunpack.c.l.s4 1934713408
      %v294 = vunpack.c.0.s8 %v293
      %v295 = vlaneseq
      %v296 = vshrl.u32 %v295, 7
      %v297 = vsub.s32 %v294, %v296
      %v298 = vrot.slane %v290, %v297
      %v300 = vunpack.c.l.s4 1934713408
      %v301 = vunpack.c.0.s8 %v300
      %v302 = vlaneseq
      %v303 = vshrl.u32 %v302, 7
      %v304 = vsub.s32 %v301, %v303
      %v305 = vrot.slane %v291, %v304
      %v306 = vcombine.low %v250, %v266
      %v307 = vcombine.high %v250, %v266
      %v309 = vunpack.c.l.s4 1934713408
      %v310 = vunpack.c.0.s8 %v309
      %v311 = vlaneseq
      %v312 = vshrl.u32 %v311, 7
      %v313 = vsub.s32 %v310, %v312
      %v314 = vrot.slane %v306, %v313
      %v316 = vunpack.c.l.s4 1934713408
      %v317 = vunpack.c.0.s8 %v316
      %v318 = vlaneseq
      %v319 = vshrl.u32 %v318, 7
      %v320 = vsub.s32 %v317, %v319
      %v321 = vrot.slane %v307, %v320
      %v322 = vcombine.low %v257, %v273
      %v323 = vcombine.high %v257, %v273
      %v325 = vunpack.c.l.s4 1934713408
      %v326 = vunpack.c.0.s8 %v325
      %v327 = vlaneseq
      %v328 = vshrl.u32 %v327, 7
      %v329 = vsub.s32 %v326, %v328
      %v330 = vrot.slane %v322, %v329
      %v332 = vunpack.c.l.s4 1934713408
      %v333 = vunpack.c.0.s8 %v332
      %v334 = vlaneseq
      %v335 = vshrl.u32 %v334, 7
      %v336 = vsub.s32 %v333, %v335
      %v337 = vrot.slane %v323, %v336
      %v338 = vcombine.low %v282, %v314
      %v339 = vcombine.high %v282, %v314
      %v340 = vcombine.low %v289, %v321
      %v341 = vcombine.high %v289, %v321
      %v342 = vcombine.low %v298, %v330
      %v343 = vcombine.high %v298, %v330
      %v344 = vcombine.low %v305, %v337
      %v345 = vcombine.high %v305, %v337
      %347 = vrot.lane.b32.xlu0 %v339, 4
      %v348 = vpop.permute.xlu0 %347
      %351 = vrot.lane.b32.xlu0 %v340, 8
      %v352 = vpop.permute.xlu0 %351
      %355 = vrot.lane.b32.xlu0 %v341, 12
      %v356 = vpop.permute.xlu0 %355
      %359 = vrot.lane.b32.xlu0 %v342, 16
      %v360 = vpop.permute.xlu0 %359
      %363 = vrot.lane.b32.xlu0 %v343, 20
      %v364 = vpop.permute.xlu0 %363
      %367 = vrot.lane.b32.xlu0 %v344, 24
      %v368 = vpop.permute.xlu0 %367
      %371 = vrot.lane.b32.xlu0 %v345, 28
      %v372 = vpop.permute.xlu0 %371
      %vm374 = vcmask 31744
      %v375 = vsel %vm374, %v338, %v348
      %vm376 = vcmask 64512
      %v377 = vsel %vm376, %v375, %v352
      %vm378 = vcmask 97280
      %v379 = vsel %vm378, %v377, %v356
      %vm380 = vcmask 130048
      %v381 = vsel %vm380, %v379, %v360
      %vm382 = vcmask 162816
      %v383 = vsel %vm382, %v381, %v364
      %vm384 = vcmask 195584
      %v385 = vsel %vm384, %v383, %v368
      %vm386 = vcmask 228352
      %v387 = vsel %vm386, %v385, %v372
      %v388 = vld [vmem:[%s1] sm:$0xff]
      %v389 = vld [vmem:[%s1 + $0x8] sm:$0xff]
      %v390 = vld [vmem:[%s1 + $0x10] sm:$0x3]
      %v392 = vsel %vm376, %v388, 0
      %v395 = vsel %vm376, %v389, 0
      %v398 = vsel %vm376, %v390, 0
      %400 = vmatprep.subr.mxu0 0.0
      %401 = vmatpush1.msra.mxu0 %v387
      %402 = vmatprep.subr.mxu0 0.0
      %403 = vmatpush1.msra.mxu0 0.0
      %404 = vmatprep.subr.mxu0 0.0
      %405 = vmatpush1.msra.mxu0 0.0
      %406 = vmatprep.subr.mxu0 0.0
      %407 = vmatpush1.msra.mxu0 0.0
      %408 = vmatprep.subr.mxu0 0.0
      %409 = vmatpush1.msra.mxu0 0.0
      %410 = vmatprep.subr.mxu0 0.0
      %411 = vmatpush1.msra.mxu0 0.0
      %412 = vmatprep.subr.mxu0 0.0
      %413 = vmatpush1.msra.mxu0 0.0
      %414 = vmatprep.subr.mxu0 0.0
      %415 = vmatpush1.msra.mxu0 0.0
      %416 = vmatprep.subr.mxu0 0.0
      %417 = vmatpush1.msra.mxu0 0.0
      %418 = vmatprep.subr.mxu0 0.0
      %419 = vmatpush1.msra.mxu0 0.0
      %420 = vmatprep.subr.mxu0 0.0
      %421 = vmatpush1.msra.mxu0 0.0
      %422 = vmatprep.subr.mxu0 0.0
      %423 = vmatpush1.msra.mxu0 0.0
      %424 = vmatprep.subr.mxu0 0.0
      %425 = vmatpush1.msra.mxu0 0.0
      %426 = vmatprep.subr.mxu0 0.0
      %427 = vmatpush1.msra.mxu0 0.0
      %428 = vmatprep.subr.mxu0 0.0
      %429 = vmatpush1.msra.mxu0 0.0
      %430 = vmatprep.subr.mxu0 0.0
      %431 = vmatpush1.msra.mxu0 0.0
      %432 = vmatprep.subr.mxu0 0.0
      %433 = vmatpush1.msra.mxu0 0.0
      %434 = vmatprep.subr.mxu0 0.0
      %435 = vmatpush1.msra.mxu0 0.0
      %436 = vmatprep.subr.mxu0 0.0
      %437 = vmatpush1.msra.mxu0 0.0
      %438 = vmatprep.subr.mxu0 0.0
      %439 = vmatpush1.msra.mxu0 0.0
      %440 = vmatprep.subr.mxu0 0.0
      %441 = vmatpush1.msra.mxu0 0.0
      %442 = vmatprep.subr.mxu0 0.0
      %443 = vmatpush1.msra.mxu0 0.0
      %444 = vmatprep.subr.mxu0 0.0
      %445 = vmatpush1.msra.mxu0 0.0
      %446 = vmatprep.subr.mxu0 0.0
      %447 = vmatpush1.msra.mxu0 0.0
      %448 = vmatprep.subr.mxu0 0.0
      %449 = vmatpush1.msra.mxu0 0.0
      %450 = vmatprep.subr.mxu0 0.0
      %451 = vmatpush1.msra.mxu0 0.0
      %452 = vmatprep.subr.mxu0 0.0
      %453 = vmatpush1.msra.mxu0 0.0
      %454 = vmatprep.subr.mxu0 0.0
      %455 = vmatpush1.msra.mxu0 0.0
      %456 = vmatprep.subr.mxu0 0.0
      %457 = vmatpush1.msra.mxu0 0.0
      %458 = vmatprep.subr.mxu0 0.0
      %459 = vmatpush1.msra.mxu0 0.0
      %460 = vmatprep.subr.mxu0 0.0
      %461 = vmatpush1.msra.mxu0 0.0
      %462 = vmatprep.subr.mxu0 0.0
      %463 = vmatpush1.msra.mxu0 0.0
      %464 = vmatprep.mubr.f32.mxu0 0.0
      %465 = vmatmul.mubr.f32.gmra.mrb[0].mxu0 %v392
      %v466 = vpop.f32.mrb[0].mxu0
      %v467 = vadd.f32 0.0, %v466
      %v468 = vpop.f32.mrb[0].mxu0
      %469 = vmatprep.mubr.f32.mxu0 0.0
      %470 = vmatmul.mubr.f32.gmra.mrb[0].mxu0 %v395
      %v471 = vpop.f32.mrb[0].mxu0
      %v472 = vadd.f32 0.0, %v471
      %v473 = vpop.f32.mrb[0].mxu0
      %474 = vmatprep.mubr.f32.mxu0 0.0
      %475 = vmatmul.mubr.f32.gmra.mrb[0].mxu0 %v398
      %v476 = vpop.f32.mrb[0].mxu0
      %v477 = vadd.f32 0.0, %v476
      %v478 = vpop.f32.mrb[0].mxu0
      %479 = vdwg.mxu0
      %483 = vrot.lane.b32.xlu0 %v467, 124
      %v484 = vpop.permute.xlu0 %483
      %485 = vrot.lane.b32.xlu0 %v472, 124
      %v486 = vpop.permute.xlu0 %485
      %487 = vrot.lane.b32.xlu0 %v477, 124
      %v488 = vpop.permute.xlu0 %487
      %492 = vrot.lane.b32.xlu0 %v467, 120
      %v493 = vpop.permute.xlu0 %492
      %494 = vrot.lane.b32.xlu0 %v472, 120
      %v495 = vpop.permute.xlu0 %494
      %496 = vrot.lane.b32.xlu0 %v477, 120
      %v497 = vpop.permute.xlu0 %496
      %501 = vrot.lane.b32.xlu0 %v467, 116
      %v502 = vpop.permute.xlu0 %501
      %503 = vrot.lane.b32.xlu0 %v472, 116
      %v504 = vpop.permute.xlu0 %503
      %505 = vrot.lane.b32.xlu0 %v477, 116
      %v506 = vpop.permute.xlu0 %505
      %510 = vrot.lane.b32.xlu0 %v467, 112
      %v511 = vpop.permute.xlu0 %510
      %512 = vrot.lane.b32.xlu0 %v472, 112
      %v513 = vpop.permute.xlu0 %512
      %514 = vrot.lane.b32.xlu0 %v477, 112
      %v515 = vpop.permute.xlu0 %514
      %519 = vrot.lane.b32.xlu0 %v467, 108
      %v520 = vpop.permute.xlu0 %519
      %521 = vrot.lane.b32.xlu0 %v472, 108
      %v522 = vpop.permute.xlu0 %521
      %523 = vrot.lane.b32.xlu0 %v477, 108
      %v524 = vpop.permute.xlu0 %523
      %528 = vrot.lane.b32.xlu0 %v467, 104
      %v529 = vpop.permute.xlu0 %528
      %530 = vrot.lane.b32.xlu0 %v472, 104
      %v531 = vpop.permute.xlu0 %530
      %532 = vrot.lane.b32.xlu0 %v477, 104
      %v533 = vpop.permute.xlu0 %532
      %537 = vrot.lane.b32.xlu0 %v467, 100
      %v538 = vpop.permute.xlu0 %537
      %539 = vrot.lane.b32.xlu0 %v472, 100
      %v540 = vpop.permute.xlu0 %539
      %541 = vrot.lane.b32.xlu0 %v477, 100
      %v542 = vpop.permute.xlu0 %541
      %v546 = vcombine.low %v467, %v493
      %v547 = vcombine.high %v467, %v493
      %v549 = vunpack.c.l.s4 1983009808
      %v550 = vunpack.c.0.s8 %v549
      %v551 = vlaneseq
      %v552 = vshrl.u32 %v551, 7
      %v553 = vsub.s32 %v550, %v552
      %v554 = vrot.slane %v546, %v553
      %v556 = vunpack.c.l.s4 1983009808
      %v557 = vunpack.c.0.s8 %v556
      %v558 = vlaneseq
      %v559 = vshrl.u32 %v558, 7
      %v560 = vsub.s32 %v557, %v559
      %v561 = vrot.slane %v547, %v560
      %v562 = vcombine.low %v484, %v502
      %v563 = vcombine.high %v484, %v502
      %v565 = vunpack.c.l.s4 1983009808
      %v566 = vunpack.c.0.s8 %v565
      %v567 = vlaneseq
      %v568 = vshrl.u32 %v567, 7
      %v569 = vsub.s32 %v566, %v568
      %v570 = vrot.slane %v562, %v569
      %v572 = vunpack.c.l.s4 1983009808
      %v573 = vunpack.c.0.s8 %v572
      %v574 = vlaneseq
      %v575 = vshrl.u32 %v574, 7
      %v576 = vsub.s32 %v573, %v575
      %v577 = vrot.slane %v563, %v576
      %v578 = vcombine.low %v511, %v529
      %v579 = vcombine.high %v511, %v529
      %v581 = vunpack.c.l.s4 1983009808
      %v582 = vunpack.c.0.s8 %v581
      %v583 = vlaneseq
      %v584 = vshrl.u32 %v583, 7
      %v585 = vsub.s32 %v582, %v584
      %v586 = vrot.slane %v578, %v585
      %v588 = vunpack.c.l.s4 1983009808
      %v589 = vunpack.c.0.s8 %v588
      %v590 = vlaneseq
      %v591 = vshrl.u32 %v590, 7
      %v592 = vsub.s32 %v589, %v591
      %v593 = vrot.slane %v579, %v592
      %v594 = vcombine.low %v520, %v538
      %v595 = vcombine.high %v520, %v538
      %v597 = vunpack.c.l.s4 1983009808
      %v598 = vunpack.c.0.s8 %v597
      %v599 = vlaneseq
      %v600 = vshrl.u32 %v599, 7
      %v601 = vsub.s32 %v598, %v600
      %v602 = vrot.slane %v594, %v601
      %v604 = vunpack.c.l.s4 1983009808
      %v605 = vunpack.c.0.s8 %v604
      %v606 = vlaneseq
      %v607 = vshrl.u32 %v606, 7
      %v608 = vsub.s32 %v605, %v607
      %v609 = vrot.slane %v595, %v608
      %v610 = vcombine.low %v554, %v570
      %v611 = vcombine.high %v554, %v570
      %v613 = vunpack.c.l.s4 1934713408
      %v614 = vunpack.c.0.s8 %v613
      %v615 = vlaneseq
      %v616 = vshrl.u32 %v615, 7
      %v617 = vsub.s32 %v614, %v616
      %v618 = vrot.slane %v610, %v617
      %v620 = vunpack.c.l.s4 1934713408
      %v621 = vunpack.c.0.s8 %v620
      %v622 = vlaneseq
      %v623 = vshrl.u32 %v622, 7
      %v624 = vsub.s32 %v621, %v623
      %v625 = vrot.slane %v611, %v624
      %v626 = vcombine.low %v561, %v577
      %v627 = vcombine.high %v561, %v577
      %v629 = vunpack.c.l.s4 1934713408
      %v630 = vunpack.c.0.s8 %v629
      %v631 = vlaneseq
      %v632 = vshrl.u32 %v631, 7
      %v633 = vsub.s32 %v630, %v632
      %v634 = vrot.slane %v626, %v633
      %v636 = vunpack.c.l.s4 1934713408
      %v637 = vunpack.c.0.s8 %v636
      %v638 = vlaneseq
      %v639 = vshrl.u32 %v638, 7
      %v640 = vsub.s32 %v637, %v639
      %v641 = vrot.slane %v627, %v640
      %v642 = vcombine.low %v586, %v602
      %v643 = vcombine.high %v586, %v602
      %v645 = vunpack.c.l.s4 1934713408
      %v646 = vunpack.c.0.s8 %v645
      %v647 = vlaneseq
      %v648 = vshrl.u32 %v647, 7
      %v649 = vsub.s32 %v646, %v648
      %v650 = vrot.slane %v642, %v649
      %v652 = vunpack.c.l.s4 1934713408
      %v653 = vunpack.c.0.s8 %v652
      %v654 = vlaneseq
      %v655 = vshrl.u32 %v654, 7
      %v656 = vsub.s32 %v653, %v655
      %v657 = vrot.slane %v643, %v656
      %v658 = vcombine.low %v593, %v609
      %v659 = vcombine.high %v593, %v609
      %v661 = vunpack.c.l.s4 1934713408
      %v662 = vunpack.c.0.s8 %v661
      %v663 = vlaneseq
      %v664 = vshrl.u32 %v663, 7
      %v665 = vsub.s32 %v662, %v664
      %v666 = vrot.slane %v658, %v665
      %v668 = vunpack.c.l.s4 1934713408
      %v669 = vunpack.c.0.s8 %v668
      %v670 = vlaneseq
      %v671 = vshrl.u32 %v670, 7
      %v672 = vsub.s32 %v669, %v671
      %v673 = vrot.slane %v659, %v672
      %v674 = vcombine.low %v618, %v650
      %v675 = vcombine.high %v618, %v650
      %v676 = vcombine.low %v625, %v657
      %v677 = vcombine.high %v625, %v657
      %v678 = vcombine.low %v634, %v666
      %v679 = vcombine.high %v634, %v666
      %v680 = vcombine.low %v641, %v673
      %v681 = vcombine.high %v641, %v673
      %v682 = vcombine.low %v472, %v495
      %v683 = vcombine.high %v472, %v495
      %v685 = vunpack.c.l.s4 1983009808
      %v686 = vunpack.c.0.s8 %v685
      %v687 = vlaneseq
      %v688 = vshrl.u32 %v687, 7
      %v689 = vsub.s32 %v686, %v688
      %v690 = vrot.slane %v682, %v689
      %v692 = vunpack.c.l.s4 1983009808
      %v693 = vunpack.c.0.s8 %v692
      %v694 = vlaneseq
      %v695 = vshrl.u32 %v694, 7
      %v696 = vsub.s32 %v693, %v695
      %v697 = vrot.slane %v683, %v696
      %v698 = vcombine.low %v486, %v504
      %v699 = vcombine.high %v486, %v504
      %v701 = vunpack.c.l.s4 1983009808
      %v702 = vunpack.c.0.s8 %v701
      %v703 = vlaneseq
      %v704 = vshrl.u32 %v703, 7
      %v705 = vsub.s32 %v702, %v704
      %v706 = vrot.slane %v698, %v705
      %v708 = vunpack.c.l.s4 1983009808
      %v709 = vunpack.c.0.s8 %v708
      %v710 = vlaneseq
      %v711 = vshrl.u32 %v710, 7
      %v712 = vsub.s32 %v709, %v711
      %v713 = vrot.slane %v699, %v712
      %v714 = vcombine.low %v513, %v531
      %v715 = vcombine.high %v513, %v531
      %v717 = vunpack.c.l.s4 1983009808
      %v718 = vunpack.c.0.s8 %v717
      %v719 = vlaneseq
      %v720 = vshrl.u32 %v719, 7
      %v721 = vsub.s32 %v718, %v720
      %v722 = vrot.slane %v714, %v721
      %v724 = vunpack.c.l.s4 1983009808
      %v725 = vunpack.c.0.s8 %v724
      %v726 = vlaneseq
      %v727 = vshrl.u32 %v726, 7
      %v728 = vsub.s32 %v725, %v727
      %v729 = vrot.slane %v715, %v728
      %v730 = vcombine.low %v522, %v540
      %v731 = vcombine.high %v522, %v540
      %v733 = vunpack.c.l.s4 1983009808
      %v734 = vunpack.c.0.s8 %v733
      %v735 = vlaneseq
      %v736 = vshrl.u32 %v735, 7
      %v737 = vsub.s32 %v734, %v736
      %v738 = vrot.slane %v730, %v737
      %v740 = vunpack.c.l.s4 1983009808
      %v741 = vunpack.c.0.s8 %v740
      %v742 = vlaneseq
      %v743 = vshrl.u32 %v742, 7
      %v744 = vsub.s32 %v741, %v743
      %v745 = vrot.slane %v731, %v744
      %v746 = vcombine.low %v690, %v706
      %v747 = vcombine.high %v690, %v706
      %v749 = vunpack.c.l.s4 1934713408
      %v750 = vunpack.c.0.s8 %v749
      %v751 = vlaneseq
      %v752 = vshrl.u32 %v751, 7
      %v753 = vsub.s32 %v750, %v752
      %v754 = vrot.slane %v746, %v753
      %v756 = vunpack.c.l.s4 1934713408
      %v757 = vunpack.c.0.s8 %v756
      %v758 = vlaneseq
      %v759 = vshrl.u32 %v758, 7
      %v760 = vsub.s32 %v757, %v759
      %v761 = vrot.slane %v747, %v760
      %v762 = vcombine.low %v697, %v713
      %v763 = vcombine.high %v697, %v713
      %v765 = vunpack.c.l.s4 1934713408
      %v766 = vunpack.c.0.s8 %v765
      %v767 = vlaneseq
      %v768 = vshrl.u32 %v767, 7
      %v769 = vsub.s32 %v766, %v768
      %v770 = vrot.slane %v762, %v769
      %v772 = vunpack.c.l.s4 1934713408
      %v773 = vunpack.c.0.s8 %v772
      %v774 = vlaneseq
      %v775 = vshrl.u32 %v774, 7
      %v776 = vsub.s32 %v773, %v775
      %v777 = vrot.slane %v763, %v776
      %v778 = vcombine.low %v722, %v738
      %v779 = vcombine.high %v722, %v738
      %v781 = vunpack.c.l.s4 1934713408
      %v782 = vunpack.c.0.s8 %v781
      %v783 = vlaneseq
      %v784 = vshrl.u32 %v783, 7
      %v785 = vsub.s32 %v782, %v784
      %v786 = vrot.slane %v778, %v785
      %v788 = vunpack.c.l.s4 1934713408
      %v789 = vunpack.c.0.s8 %v788
      %v790 = vlaneseq
      %v791 = vshrl.u32 %v790, 7
      %v792 = vsub.s32 %v789, %v791
      %v793 = vrot.slane %v779, %v792
      %v794 = vcombine.low %v729, %v745
      %v795 = vcombine.high %v729, %v745
      %v797 = vunpack.c.l.s4 1934713408
      %v798 = vunpack.c.0.s8 %v797
      %v799 = vlaneseq
      %v800 = vshrl.u32 %v799, 7
      %v801 = vsub.s32 %v798, %v800
      %v802 = vrot.slane %v794, %v801
      %v804 = vunpack.c.l.s4 1934713408
      %v805 = vunpack.c.0.s8 %v804
      %v806 = vlaneseq
      %v807 = vshrl.u32 %v806, 7
      %v808 = vsub.s32 %v805, %v807
      %v809 = vrot.slane %v795, %v808
      %v810 = vcombine.low %v754, %v786
      %v811 = vcombine.high %v754, %v786
      %v812 = vcombine.low %v761, %v793
      %v813 = vcombine.high %v761, %v793
      %v814 = vcombine.low %v770, %v802
      %v815 = vcombine.high %v770, %v802
      %v816 = vcombine.low %v777, %v809
      %v817 = vcombine.high %v777, %v809
      %v818 = vcombine.low %v477, %v497
      %v820 = vunpack.c.l.s4 1983009808
      %v821 = vunpack.c.0.s8 %v820
      %v822 = vlaneseq
      %v823 = vshrl.u32 %v822, 7
      %v824 = vsub.s32 %v821, %v823
      %v825 = vrot.slane %v818, %v824
      %v826 = vcombine.low %v488, %v506
      %v828 = vunpack.c.l.s4 1983009808
      %v829 = vunpack.c.0.s8 %v828
      %v830 = vlaneseq
      %v831 = vshrl.u32 %v830, 7
      %v832 = vsub.s32 %v829, %v831
      %v833 = vrot.slane %v826, %v832
      %v834 = vcombine.low %v515, %v533
      %v836 = vunpack.c.l.s4 1983009808
      %v837 = vunpack.c.0.s8 %v836
      %v838 = vlaneseq
      %v839 = vshrl.u32 %v838, 7
      %v840 = vsub.s32 %v837, %v839
      %v841 = vrot.slane %v834, %v840
      %v842 = vcombine.low %v524, %v542
      %v844 = vunpack.c.l.s4 1983009808
      %v845 = vunpack.c.0.s8 %v844
      %v846 = vlaneseq
      %v847 = vshrl.u32 %v846, 7
      %v848 = vsub.s32 %v845, %v847
      %v849 = vrot.slane %v842, %v848
      %v850 = vcombine.low %v825, %v833
      %v852 = vunpack.c.l.s4 1934713408
      %v853 = vunpack.c.0.s8 %v852
      %v854 = vlaneseq
      %v855 = vshrl.u32 %v854, 7
      %v856 = vsub.s32 %v853, %v855
      %v857 = vrot.slane %v850, %v856
      %v858 = vcombine.low %v841, %v849
      %v860 = vunpack.c.l.s4 1934713408
      %v861 = vunpack.c.0.s8 %v860
      %v862 = vlaneseq
      %v863 = vshrl.u32 %v862, 7
      %v864 = vsub.s32 %v861, %v863
      %v865 = vrot.slane %v858, %v864
      %v866 = vcombine.low %v857, %v865
      %v867 = vcombine.high %v857, %v865
      %v868 = vld [vmem:[%s2] sm:$0xff]
      %v869 = vld [vmem:[%s2 + $0x8] sm:$0xff]
      %v870 = vld [vmem:[%s2 + $0x10] sm:$0xff]
      %v872 = vsel %vm376, %v868, 0
      %v875 = vsel %vm376, %v869, 0
      %v878 = vsel %vm376, %v870, 0
      %880 = vmatprep.subr.mxu0 0.0
      %881 = vmatpush1.msra.mxu0 %v674
      %882 = vmatprep.subr.mxu0 0.0
      %883 = vmatpush1.msra.mxu0 0.0
      %884 = vmatprep.subr.mxu0 0.0
      %885 = vmatpush1.msra.mxu0 0.0
      %886 = vmatprep.subr.mxu0 0.0
      %887 = vmatpush1.msra.mxu0 0.0
      %888 = vmatprep.subr.mxu0 0.0
      %889 = vmatpush1.msra.mxu0 0.0
      %890 = vmatprep.subr.mxu0 0.0
      %891 = vmatpush1.msra.mxu0 0.0
      %892 = vmatprep.subr.mxu0 0.0
      %893 = vmatpush1.msra.mxu0 0.0
      %894 = vmatprep.subr.mxu0 0.0
      %895 = vmatpush1.msra.mxu0 0.0
      %896 = vmatprep.subr.mxu0 0.0
      %897 = vmatpush1.msra.mxu0 0.0
      %898 = vmatprep.subr.mxu0 0.0
      %899 = vmatpush1.msra.mxu0 0.0
      %900 = vmatprep.subr.mxu0 0.0
      %901 = vmatpush1.msra.mxu0 0.0
      %902 = vmatprep.subr.mxu0 0.0
      %903 = vmatpush1.msra.mxu0 0.0
      %904 = vmatprep.subr.mxu0 0.0
      %905 = vmatpush1.msra.mxu0 0.0
      %906 = vmatprep.subr.mxu0 0.0
      %907 = vmatpush1.msra.mxu0 0.0
      %908 = vmatprep.subr.mxu0 0.0
      %909 = vmatpush1.msra.mxu0 0.0
      %910 = vmatprep.subr.mxu0 0.0
      %911 = vmatpush1.msra.mxu0 0.0
      %912 = vmatprep.subr.mxu0 0.0
      %913 = vmatpush1.msra.mxu0 0.0
      %914 = vmatprep.subr.mxu0 0.0
      %915 = vmatpush1.msra.mxu0 0.0
      %916 = vmatprep.subr.mxu0 0.0
      %917 = vmatpush1.msra.mxu0 0.0
      %918 = vmatprep.subr.mxu0 0.0
      %919 = vmatpush1.msra.mxu0 0.0
      %920 = vmatprep.subr.mxu0 0.0
      %921 = vmatpush1.msra.mxu0 0.0
      %922 = vmatprep.subr.mxu0 0.0
      %923 = vmatpush1.msra.mxu0 0.0
      %924 = vmatprep.subr.mxu0 0.0
      %925 = vmatpush1.msra.mxu0 0.0
      %926 = vmatprep.subr.mxu0 0.0
      %927 = vmatpush1.msra.mxu0 0.0
      %928 = vmatprep.subr.mxu0 0.0
      %929 = vmatpush1.msra.mxu0 0.0
      %930 = vmatprep.subr.mxu0 0.0
      %931 = vmatpush1.msra.mxu0 0.0
      %932 = vmatprep.subr.mxu0 0.0
      %933 = vmatpush1.msra.mxu0 0.0
      %934 = vmatprep.subr.mxu0 0.0
      %935 = vmatpush1.msra.mxu0 0.0
      %936 = vmatprep.subr.mxu0 0.0
      %937 = vmatpush1.msra.mxu0 0.0
      %938 = vmatprep.subr.mxu0 0.0
      %939 = vmatpush1.msra.mxu0 0.0
      %940 = vmatprep.subr.mxu0 0.0
      %941 = vmatpush1.msra.mxu0 0.0
      %942 = vmatprep.subr.mxu0 0.0
      %943 = vmatpush1.msra.mxu0 0.0
      %944 = vmatprep.mubr.f32.mxu0 0.0
      %945 = vmatmul.mubr.f32.gmra.mrb[0].mxu0 %v872
      %v946 = vpop.f32.mrb[0].mxu0
      %v947 = vadd.f32 0.0, %v946
      %v948 = vpop.f32.mrb[0].mxu0
      %949 = vmatprep.mubr.f32.mxu0 0.0
      %950 = vmatmul.mubr.f32.gmra.mrb[0].mxu0 %v875
      %v951 = vpop.f32.mrb[0].mxu0
      %v952 = vadd.f32 0.0, %v951
      %v953 = vpop.f32.mrb[0].mxu0
      %954 = vmatprep.mubr.f32.mxu0 0.0
      %955 = vmatmul.mubr.f32.gmra.mrb[0].mxu0 %v878
      %v956 = vpop.f32.mrb[0].mxu0
      %v957 = vadd.f32 0.0, %v956
      %v958 = vpop.f32.mrb[0].mxu0
      %959 = vdwg.mxu0
      %960 = vmatprep.subr.mxu0 0.0
      %961 = vmatpush1.msra.mxu0 %v675
      %962 = vmatprep.subr.mxu0 0.0
      %963 = vmatpush1.msra.mxu0 0.0
      %964 = vmatprep.subr.mxu0 0.0
      %965 = vmatpush1.msra.mxu0 0.0
      %966 = vmatprep.subr.mxu0 0.0
      %967 = vmatpush1.msra.mxu0 0.0
      %968 = vmatprep.subr.mxu0 0.0
      %969 = vmatpush1.msra.mxu0 0.0
      %970 = vmatprep.subr.mxu0 0.0
      %971 = vmatpush1.msra.mxu0 0.0
      %972 = vmatprep.subr.mxu0 0.0
      %973 = vmatpush1.msra.mxu0 0.0
      %974 = vmatprep.subr.mxu0 0.0
      %975 = vmatpush1.msra.mxu0 0.0
      %976 = vmatprep.subr.mxu0 0.0
      %977 = vmatpush1.msra.mxu0 0.0
      %978 = vmatprep.subr.mxu0 0.0
      %979 = vmatpush1.msra.mxu0 0.0
      %980 = vmatprep.subr.mxu0 0.0
      %981 = vmatpush1.msra.mxu0 0.0
      %982 = vmatprep.subr.mxu0 0.0
      %983 = vmatpush1.msra.mxu0 0.0
      %984 = vmatprep.subr.mxu0 0.0
      %985 = vmatpush1.msra.mxu0 0.0
      %986 = vmatprep.subr.mxu0 0.0
      %987 = vmatpush1.msra.mxu0 0.0
      %988 = vmatprep.subr.mxu0 0.0
      %989 = vmatpush1.msra.mxu0 0.0
      %990 = vmatprep.subr.mxu0 0.0
      %991 = vmatpush1.msra.mxu0 0.0
      %992 = vmatprep.subr.mxu0 0.0
      %993 = vmatpush1.msra.mxu0 0.0
      %994 = vmatprep.subr.mxu0 0.0
      %995 = vmatpush1.msra.mxu0 0.0
      %996 = vmatprep.subr.mxu0 0.0
      %997 = vmatpush1.msra.mxu0 0.0
      %998 = vmatprep.subr.mxu0 0.0
      %999 = vmatpush1.msra.mxu0 0.0
      %1000 = vmatprep.subr.mxu0 0.0
      %1001 = vmatpush1.msra.mxu0 0.0
      %1002 = vmatprep.subr.mxu0 0.0
      %1003 = vmatpush1.msra.mxu0 0.0
      %1004 = vmatprep.subr.mxu0 0.0
      %1005 = vmatpush1.msra.mxu0 0.0
      %1006 = vmatprep.subr.mxu0 0.0
      %1007 = vmatpush1.msra.mxu0 0.0
      %1008 = vmatprep.subr.mxu0 0.0
      %1009 = vmatpush1.msra.mxu0 0.0
      %1010 = vmatprep.subr.mxu0 0.0
      %1011 = vmatpush1.msra.mxu0 0.0
      %1012 = vmatprep.subr.mxu0 0.0
      %1013 = vmatpush1.msra.mxu0 0.0
      %1014 = vmatprep.subr.mxu0 0.0
      %1015 = vmatpush1.msra.mxu0 0.0
      %1016 = vmatprep.subr.mxu0 0.0
      %1017 = vmatpush1.msra.mxu0 0.0
      %1018 = vmatprep.subr.mxu0 0.0
      %1019 = vmatpush1.msra.mxu0 0.0
      %1020 = vmatprep.subr.mxu0 0.0
      %1021 = vmatpush1.msra.mxu0 0.0
      %1022 = vmatprep.subr.mxu0 0.0
      %1023 = vmatpush1.msra.mxu0 0.0
      %1024 = vmatprep.mubr.f32.mxu0 0.0
      %1025 = vmatmul.mubr.f32.gmra.mrb[0].mxu0 %v872
      %v1026 = vpop.f32.mrb[0].mxu0
      %v1027 = vadd.f32 0.0, %v1026
      %v1028 = vpop.f32.mrb[0].mxu0
      %1029 = vmatprep.mubr.f32.mxu0 0.0
      %1030 = vmatmul.mubr.f32.gmra.mrb[0].mxu0 %v875
      %v1031 = vpop.f32.mrb[0].mxu0
      %v1032 = vadd.f32 0.0, %v1031
      %v1033 = vpop.f32.mrb[0].mxu0
      %1034 = vmatprep.mubr.f32.mxu0 0.0
      %1035 = vmatmul.mubr.f32.gmra.mrb[0].mxu0 %v878
      %v1036 = vpop.f32.mrb[0].mxu0
      %v1037 = vadd.f32 0.0, %v1036
      %v1038 = vpop.f32.mrb[0].mxu0
      %1039 = vdwg.mxu0
      %1040 = vmatprep.subr.mxu0 0.0
      %1041 = vmatpush1.msra.mxu0 %v676
      %1042 = vmatprep.subr.mxu0 0.0
      %1043 = vmatpush1.msra.mxu0 0.0
      %1044 = vmatprep.subr.mxu0 0.0
      %1045 = vmatpush1.msra.mxu0 0.0
      %1046 = vmatprep.subr.mxu0 0.0
      %1047 = vmatpush1.msra.mxu0 0.0
      %1048 = vmatprep.subr.mxu0 0.0
      %1049 = vmatpush1.msra.mxu0 0.0
      %1050 = vmatprep.subr.mxu0 0.0
      %1051 = vmatpush1.msra.mxu0 0.0
      %1052 = vmatprep.subr.mxu0 0.0
      %1053 = vmatpush1.msra.mxu0 0.0
      %1054 = vmatprep.subr.mxu0 0.0
      %1055 = vmatpush1.msra.mxu0 0.0
      %1056 = vmatprep.subr.mxu0 0.0
      %1057 = vmatpush1.msra.mxu0 0.0
      %1058 = vmatprep.subr.mxu0 0.0
      %1059 = vmatpush1.msra.mxu0 0.0
      %1060 = vmatprep.subr.mxu0 0.0
      %1061 = vmatpush1.msra.mxu0 0.0
      %1062 = vmatprep.subr.mxu0 0.0
      %1063 = vmatpush1.msra.mxu0 0.0
      %1064 = vmatprep.subr.mxu0 0.0
      %1065 = vmatpush1.msra.mxu0 0.0
      %1066 = vmatprep.subr.mxu0 0.0
      %1067 = vmatpush1.msra.mxu0 0.0
      %1068 = vmatprep.subr.mxu0 0.0
      %1069 = vmatpush1.msra.mxu0 0.0
      %1070 = vmatprep.subr.mxu0 0.0
      %1071 = vmatpush1.msra.mxu0 0.0
      %1072 = vmatprep.subr.mxu0 0.0
      %1073 = vmatpush1.msra.mxu0 0.0
      %1074 = vmatprep.subr.mxu0 0.0
      %1075 = vmatpush1.msra.mxu0 0.0
      %1076 = vmatprep.subr.mxu0 0.0
      %1077 = vmatpush1.msra.mxu0 0.0
      %1078 = vmatprep.subr.mxu0 0.0
      %1079 = vmatpush1.msra.mxu0 0.0
      %1080 = vmatprep.subr.mxu0 0.0
      %1081 = vmatpush1.msra.mxu0 0.0
      %1082 = vmatprep.subr.mxu0 0.0
      %1083 = vmatpush1.msra.mxu0 0.0
      %1084 = vmatprep.subr.mxu0 0.0
      %1085 = vmatpush1.msra.mxu0 0.0
      %1086 = vmatprep.subr.mxu0 0.0
      %1087 = vmatpush1.msra.mxu0 0.0
      %1088 = vmatprep.subr.mxu0 0.0
      %1089 = vmatpush1.msra.mxu0 0.0
      %1090 = vmatprep.subr.mxu0 0.0
      %1091 = vmatpush1.msra.mxu0 0.0
      %1092 = vmatprep.subr.mxu0 0.0
      %1093 = vmatpush1.msra.mxu0 0.0
      %1094 = vmatprep.subr.mxu0 0.0
      %1095 = vmatpush1.msra.mxu0 0.0
      %1096 = vmatprep.subr.mxu0 0.0
      %1097 = vmatpush1.msra.mxu0 0.0
      %1098 = vmatprep.subr.mxu0 0.0
      %1099 = vmatpush1.msra.mxu0 0.0
      %1100 = vmatprep.subr.mxu0 0.0
      %1101 = vmatpush1.msra.mxu0 0.0
      %1102 = vmatprep.subr.mxu0 0.0
      %1103 = vmatpush1.msra.mxu0 0.0
      %1104 = vmatprep.mubr.f32.mxu0 0.0
      %1105 = vmatmul.mubr.f32.gmra.mrb[0].mxu0 %v872
      %v1106 = vpop.f32.mrb[0].mxu0
      %v1107 = vadd.f32 0.0, %v1106
      %v1108 = vpop.f32.mrb[0].mxu0
      %1109 = vmatprep.mubr.f32.mxu0 0.0
      %1110 = vmatmul.mubr.f32.gmra.mrb[0].mxu0 %v875
      %v1111 = vpop.f32.mrb[0].mxu0
      %v1112 = vadd.f32 0.0, %v1111
      %v1113 = vpop.f32.mrb[0].mxu0
      %1114 = vmatprep.mubr.f32.mxu0 0.0
      %1115 = vmatmul.mubr.f32.gmra.mrb[0].mxu0 %v878
      %v1116 = vpop.f32.mrb[0].mxu0
      %v1117 = vadd.f32 0.0, %v1116
      %v1118 = vpop.f32.mrb[0].mxu0
      %1119 = vdwg.mxu0
      %1120 = vmatprep.subr.mxu0 0.0
      %1121 = vmatpush1.msra.mxu0 %v677
      %1122 = vmatprep.subr.mxu0 0.0
      %1123 = vmatpush1.msra.mxu0 0.0
      %1124 = vmatprep.subr.mxu0 0.0
      %1125 = vmatpush1.msra.mxu0 0.0
      %1126 = vmatprep.subr.mxu0 0.0
      %1127 = vmatpush1.msra.mxu0 0.0
      %1128 = vmatprep.subr.mxu0 0.0
      %1129 = vmatpush1.msra.mxu0 0.0
      %1130 = vmatprep.subr.mxu0 0.0
      %1131 = vmatpush1.msra.mxu0 0.0
      %1132 = vmatprep.subr.mxu0 0.0
      %1133 = vmatpush1.msra.mxu0 0.0
      %1134 = vmatprep.subr.mxu0 0.0
      %1135 = vmatpush1.msra.mxu0 0.0
      %1136 = vmatprep.subr.mxu0 0.0
      %1137 = vmatpush1.msra.mxu0 0.0
      %1138 = vmatprep.subr.mxu0 0.0
      %1139 = vmatpush1.msra.mxu0 0.0
      %1140 = vmatprep.subr.mxu0 0.0
      %1141 = vmatpush1.msra.mxu0 0.0
      %1142 = vmatprep.subr.mxu0 0.0
      %1143 = vmatpush1.msra.mxu0 0.0
      %1144 = vmatprep.subr.mxu0 0.0
      %1145 = vmatpush1.msra.mxu0 0.0
      %1146 = vmatprep.subr.mxu0 0.0
      %1147 = vmatpush1.msra.mxu0 0.0
      %1148 = vmatprep.subr.mxu0 0.0
      %1149 = vmatpush1.msra.mxu0 0.0
      %1150 = vmatprep.subr.mxu0 0.0
      %1151 = vmatpush1.msra.mxu0 0.0
      %1152 = vmatprep.subr.mxu0 0.0
      %1153 = vmatpush1.msra.mxu0 0.0
      %1154 = vmatprep.subr.mxu0 0.0
      %1155 = vmatpush1.msra.mxu0 0.0
      %1156 = vmatprep.subr.mxu0 0.0
      %1157 = vmatpush1.msra.mxu0 0.0
      %1158 = vmatprep.subr.mxu0 0.0
      %1159 = vmatpush1.msra.mxu0 0.0
      %1160 = vmatprep.subr.mxu0 0.0
      %1161 = vmatpush1.msra.mxu0 0.0
      %1162 = vmatprep.subr.mxu0 0.0
      %1163 = vmatpush1.msra.mxu0 0.0
      %1164 = vmatprep.subr.mxu0 0.0
      %1165 = vmatpush1.msra.mxu0 0.0
      %1166 = vmatprep.subr.mxu0 0.0
      %1167 = vmatpush1.msra.mxu0 0.0
      %1168 = vmatprep.subr.mxu0 0.0
      %1169 = vmatpush1.msra.mxu0 0.0
      %1170 = vmatprep.subr.mxu0 0.0
      %1171 = vmatpush1.msra.mxu0 0.0
      %1172 = vmatprep.subr.mxu0 0.0
      %1173 = vmatpush1.msra.mxu0 0.0
      %1174 = vmatprep.subr.mxu0 0.0
      %1175 = vmatpush1.msra.mxu0 0.0
      %1176 = vmatprep.subr.mxu0 0.0
      %1177 = vmatpush1.msra.mxu0 0.0
      %1178 = vmatprep.subr.mxu0 0.0
      %1179 = vmatpush1.msra.mxu0 0.0
      %1180 = vmatprep.subr.mxu0 0.0
      %1181 = vmatpush1.msra.mxu0 0.0
      %1182 = vmatprep.subr.mxu0 0.0
      %1183 = vmatpush1.msra.mxu0 0.0
      %1184 = vmatprep.mubr.f32.mxu0 0.0
      %1185 = vmatmul.mubr.f32.gmra.mrb[0].mxu0 %v872
      %v1186 = vpop.f32.mrb[0].mxu0
      %v1187 = vadd.f32 0.0, %v1186
      %v1188 = vpop.f32.mrb[0].mxu0
      %1189 = vmatprep.mubr.f32.mxu0 0.0
      %1190 = vmatmul.mubr.f32.gmra.mrb[0].mxu0 %v875
      %v1191 = vpop.f32.mrb[0].mxu0
      %v1192 = vadd.f32 0.0, %v1191
      %v1193 = vpop.f32.mrb[0].mxu0
      %1194 = vmatprep.mubr.f32.mxu0 0.0
      %1195 = vmatmul.mubr.f32.gmra.mrb[0].mxu0 %v878
      %v1196 = vpop.f32.mrb[0].mxu0
      %v1197 = vadd.f32 0.0, %v1196
      %v1198 = vpop.f32.mrb[0].mxu0
      %1199 = vdwg.mxu0
      %1200 = vmatprep.subr.mxu0 0.0
      %1201 = vmatpush1.msra.mxu0 %v678
      %1202 = vmatprep.subr.mxu0 0.0
      %1203 = vmatpush1.msra.mxu0 0.0
      %1204 = vmatprep.subr.mxu0 0.0
      %1205 = vmatpush1.msra.mxu0 0.0
      %1206 = vmatprep.subr.mxu0 0.0
      %1207 = vmatpush1.msra.mxu0 0.0
      %1208 = vmatprep.subr.mxu0 0.0
      %1209 = vmatpush1.msra.mxu0 0.0
      %1210 = vmatprep.subr.mxu0 0.0
      %1211 = vmatpush1.msra.mxu0 0.0
      %1212 = vmatprep.subr.mxu0 0.0
      %1213 = vmatpush1.msra.mxu0 0.0
      %1214 = vmatprep.subr.mxu0 0.0
      %1215 = vmatpush1.msra.mxu0 0.0
      %1216 = vmatprep.subr.mxu0 0.0
      %1217 = vmatpush1.msra.mxu0 0.0
      %1218 = vmatprep.subr.mxu0 0.0
      %1219 = vmatpush1.msra.mxu0 0.0
      %1220 = vmatprep.subr.mxu0 0.0
      %1221 = vmatpush1.msra.mxu0 0.0
      %1222 = vmatprep.subr.mxu0 0.0
      %1223 = vmatpush1.msra.mxu0 0.0
      %1224 = vmatprep.subr.mxu0 0.0
      %1225 = vmatpush1.msra.mxu0 0.0
      %1226 = vmatprep.subr.mxu0 0.0
      %1227 = vmatpush1.msra.mxu0 0.0
      %1228 = vmatprep.subr.mxu0 0.0
      %1229 = vmatpush1.msra.mxu0 0.0
      %1230 = vmatprep.subr.mxu0 0.0
      %1231 = vmatpush1.msra.mxu0 0.0
      %1232 = vmatprep.subr.mxu0 0.0
      %1233 = vmatpush1.msra.mxu0 0.0
      %1234 = vmatprep.subr.mxu0 0.0
      %1235 = vmatpush1.msra.mxu0 0.0
      %1236 = vmatprep.subr.mxu0 0.0
      %1237 = vmatpush1.msra.mxu0 0.0
      %1238 = vmatprep.subr.mxu0 0.0
      %1239 = vmatpush1.msra.mxu0 0.0
      %1240 = vmatprep.subr.mxu0 0.0
      %1241 = vmatpush1.msra.mxu0 0.0
      %1242 = vmatprep.subr.mxu0 0.0
      %1243 = vmatpush1.msra.mxu0 0.0
      %1244 = vmatprep.subr.mxu0 0.0
      %1245 = vmatpush1.msra.mxu0 0.0
      %1246 = vmatprep.subr.mxu0 0.0
      %1247 = vmatpush1.msra.mxu0 0.0
      %1248 = vmatprep.subr.mxu0 0.0
      %1249 = vmatpush1.msra.mxu0 0.0
      %1250 = vmatprep.subr.mxu0 0.0
      %1251 = vmatpush1.msra.mxu0 0.0
      %1252 = vmatprep.subr.mxu0 0.0
      %1253 = vmatpush1.msra.mxu0 0.0
      %1254 = vmatprep.subr.mxu0 0.0
      %1255 = vmatpush1.msra.mxu0 0.0
      %1256 = vmatprep.subr.mxu0 0.0
      %1257 = vmatpush1.msra.mxu0 0.0
      %1258 = vmatprep.subr.mxu0 0.0
      %1259 = vmatpush1.msra.mxu0 0.0
      %1260 = vmatprep.subr.mxu0 0.0
      %1261 = vmatpush1.msra.mxu0 0.0
      %1262 = vmatprep.subr.mxu0 0.0
      %1263 = vmatpush1.msra.mxu0 0.0
      %1264 = vmatprep.mubr.f32.mxu0 0.0
      %1265 = vmatmul.mubr.f32.gmra.mrb[0].mxu0 %v872
      %v1266 = vpop.f32.mrb[0].mxu0
      %v1267 = vadd.f32 0.0, %v1266
      %v1268 = vpop.f32.mrb[0].mxu0
      %1269 = vmatprep.mubr.f32.mxu0 0.0
      %1270 = vmatmul.mubr.f32.gmra.mrb[0].mxu0 %v875
      %v1271 = vpop.f32.mrb[0].mxu0
      %v1272 = vadd.f32 0.0, %v1271
      %v1273 = vpop.f32.mrb[0].mxu0
      %1274 = vmatprep.mubr.f32.mxu0 0.0
      %1275 = vmatmul.mubr.f32.gmra.mrb[0].mxu0 %v878
      %v1276 = vpop.f32.mrb[0].mxu0
      %v1277 = vadd.f32 0.0, %v1276
      %v1278 = vpop.f32.mrb[0].mxu0
      %1279 = vdwg.mxu0
      %1280 = vmatprep.subr.mxu0 0.0
      %1281 = vmatpush1.msra.mxu0 %v679
      %1282 = vmatprep.subr.mxu0 0.0
      %1283 = vmatpush1.msra.mxu0 0.0
      %1284 = vmatprep.subr.mxu0 0.0
      %1285 = vmatpush1.msra.mxu0 0.0
      %1286 = vmatprep.subr.mxu0 0.0
      %1287 = vmatpush1.msra.mxu0 0.0
      %1288 = vmatprep.subr.mxu0 0.0
      %1289 = vmatpush1.msra.mxu0 0.0
      %1290 = vmatprep.subr.mxu0 0.0
      %1291 = vmatpush1.msra.mxu0 0.0
      %1292 = vmatprep.subr.mxu0 0.0
      %1293 = vmatpush1.msra.mxu0 0.0
      %1294 = vmatprep.subr.mxu0 0.0
      %1295 = vmatpush1.msra.mxu0 0.0
      %1296 = vmatprep.subr.mxu0 0.0
      %1297 = vmatpush1.msra.mxu0 0.0
      %1298 = vmatprep.subr.mxu0 0.0
      %1299 = vmatpush1.msra.mxu0 0.0
      %1300 = vmatprep.subr.mxu0 0.0
      %1301 = vmatpush1.msra.mxu0 0.0
      %1302 = vmatprep.subr.mxu0 0.0
      %1303 = vmatpush1.msra.mxu0 0.0
      %1304 = vmatprep.subr.mxu0 0.0
      %1305 = vmatpush1.msra.mxu0 0.0
      %1306 = vmatprep.subr.mxu0 0.0
      %1307 = vmatpush1.msra.mxu0 0.0
      %1308 = vmatprep.subr.mxu0 0.0
      %1309 = vmatpush1.msra.mxu0 0.0
      %1310 = vmatprep.subr.mxu0 0.0
      %1311 = vmatpush1.msra.mxu0 0.0
      %1312 = vmatprep.subr.mxu0 0.0
      %1313 = vmatpush1.msra.mxu0 0.0
      %1314 = vmatprep.subr.mxu0 0.0
      %1315 = vmatpush1.msra.mxu0 0.0
      %1316 = vmatprep.subr.mxu0 0.0
      %1317 = vmatpush1.msra.mxu0 0.0
      %1318 = vmatprep.subr.mxu0 0.0
      %1319 = vmatpush1.msra.mxu0 0.0
      %1320 = vmatprep.subr.mxu0 0.0
      %1321 = vmatpush1.msra.mxu0 0.0
      %1322 = vmatprep.subr.mxu0 0.0
      %1323 = vmatpush1.msra.mxu0 0.0
      %1324 = vmatprep.subr.mxu0 0.0
      %1325 = vmatpush1.msra.mxu0 0.0
      %1326 = vmatprep.subr.mxu0 0.0
      %1327 = vmatpush1.msra.mxu0 0.0
      %1328 = vmatprep.subr.mxu0 0.0
      %1329 = vmatpush1.msra.mxu0 0.0
      %1330 = vmatprep.subr.mxu0 0.0
      %1331 = vmatpush1.msra.mxu0 0.0
      %1332 = vmatprep.subr.mxu0 0.0
      %1333 = vmatpush1.msra.mxu0 0.0
      %1334 = vmatprep.subr.mxu0 0.0
      %1335 = vmatpush1.msra.mxu0 0.0
      %1336 = vmatprep.subr.mxu0 0.0
      %1337 = vmatpush1.msra.mxu0 0.0
      %1338 = vmatprep.subr.mxu0 0.0
      %1339 = vmatpush1.msra.mxu0 0.0
      %1340 = vmatprep.subr.mxu0 0.0
      %1341 = vmatpush1.msra.mxu0 0.0
      %1342 = vmatprep.subr.mxu0 0.0
      %1343 = vmatpush1.msra.mxu0 0.0
      %1344 = vmatprep.mubr.f32.mxu0 0.0
      %1345 = vmatmul.mubr.f32.gmra.mrb[0].mxu0 %v872
      %v1346 = vpop.f32.mrb[0].mxu0
      %v1347 = vadd.f32 0.0, %v1346
      %v1348 = vpop.f32.mrb[0].mxu0
      %1349 = vmatprep.mubr.f32.mxu0 0.0
      %1350 = vmatmul.mubr.f32.gmra.mrb[0].mxu0 %v875
      %v1351 = vpop.f32.mrb[0].mxu0
      %v1352 = vadd.f32 0.0, %v1351
      %v1353 = vpop.f32.mrb[0].mxu0
      %1354 = vmatprep.mubr.f32.mxu0 0.0
      %1355 = vmatmul.mubr.f32.gmra.mrb[0].mxu0 %v878
      %v1356 = vpop.f32.mrb[0].mxu0
      %v1357 = vadd.f32 0.0, %v1356
      %v1358 = vpop.f32.mrb[0].mxu0
      %1359 = vdwg.mxu0
      %1360 = vmatprep.subr.mxu0 0.0
      %1361 = vmatpush1.msra.mxu0 %v680
      %1362 = vmatprep.subr.mxu0 0.0
      %1363 = vmatpush1.msra.mxu0 0.0
      %1364 = vmatprep.subr.mxu0 0.0
      %1365 = vmatpush1.msra.mxu0 0.0
      %1366 = vmatprep.subr.mxu0 0.0
      %1367 = vmatpush1.msra.mxu0 0.0
      %1368 = vmatprep.subr.mxu0 0.0
      %1369 = vmatpush1.msra.mxu0 0.0
      %1370 = vmatprep.subr.mxu0 0.0
      %1371 = vmatpush1.msra.mxu0 0.0
      %1372 = vmatprep.subr.mxu0 0.0
      %1373 = vmatpush1.msra.mxu0 0.0
      %1374 = vmatprep.subr.mxu0 0.0
      %1375 = vmatpush1.msra.mxu0 0.0
      %1376 = vmatprep.subr.mxu0 0.0
      %1377 = vmatpush1.msra.mxu0 0.0
      %1378 = vmatprep.subr.mxu0 0.0
      %1379 = vmatpush1.msra.mxu0 0.0
      %1380 = vmatprep.subr.mxu0 0.0
      %1381 = vmatpush1.msra.mxu0 0.0
      %1382 = vmatprep.subr.mxu0 0.0
      %1383 = vmatpush1.msra.mxu0 0.0
      %1384 = vmatprep.subr.mxu0 0.0
      %1385 = vmatpush1.msra.mxu0 0.0
      %1386 = vmatprep.subr.mxu0 0.0
      %1387 = vmatpush1.msra.mxu0 0.0
      %1388 = vmatprep.subr.mxu0 0.0
      %1389 = vmatpush1.msra.mxu0 0.0
      %1390 = vmatprep.subr.mxu0 0.0
      %1391 = vmatpush1.msra.mxu0 0.0
      %1392 = vmatprep.subr.mxu0 0.0
      %1393 = vmatpush1.msra.mxu0 0.0
      %1394 = vmatprep.subr.mxu0 0.0
      %1395 = vmatpush1.msra.mxu0 0.0
      %1396 = vmatprep.subr.mxu0 0.0
      %1397 = vmatpush1.msra.mxu0 0.0
      %1398 = vmatprep.subr.mxu0 0.0
      %1399 = vmatpush1.msra.mxu0 0.0
      %1400 = vmatprep.subr.mxu0 0.0
      %1401 = vmatpush1.msra.mxu0 0.0
      %1402 = vmatprep.subr.mxu0 0.0
      %1403 = vmatpush1.msra.mxu0 0.0
      %1404 = vmatprep.subr.mxu0 0.0
      %1405 = vmatpush1.msra.mxu0 0.0
      %1406 = vmatprep.subr.mxu0 0.0
      %1407 = vmatpush1.msra.mxu0 0.0
      %1408 = vmatprep.subr.mxu0 0.0
      %1409 = vmatpush1.msra.mxu0 0.0
      %1410 = vmatprep.subr.mxu0 0.0
      %1411 = vmatpush1.msra.mxu0 0.0
      %1412 = vmatprep.subr.mxu0 0.0
      %1413 = vmatpush1.msra.mxu0 0.0
      %1414 = vmatprep.subr.mxu0 0.0
      %1415 = vmatpush1.msra.mxu0 0.0
      %1416 = vmatprep.subr.mxu0 0.0
      %1417 = vmatpush1.msra.mxu0 0.0
      %1418 = vmatprep.subr.mxu0 0.0
      %1419 = vmatpush1.msra.mxu0 0.0
      %1420 = vmatprep.subr.mxu0 0.0
      %1421 = vmatpush1.msra.mxu0 0.0
      %1422 = vmatprep.subr.mxu0 0.0
      %1423 = vmatpush1.msra.mxu0 0.0
      %1424 = vmatprep.mubr.f32.mxu0 0.0
      %1425 = vmatmul.mubr.f32.gmra.mrb[0].mxu0 %v872
      %v1426 = vpop.f32.mrb[0].mxu0
      %v1427 = vadd.f32 0.0, %v1426
      %v1428 = vpop.f32.mrb[0].mxu0
      %1429 = vmatprep.mubr.f32.mxu0 0.0
      %1430 = vmatmul.mubr.f32.gmra.mrb[0].mxu0 %v875
      %v1431 = vpop.f32.mrb[0].mxu0
      %v1432 = vadd.f32 0.0, %v1431
      %v1433 = vpop.f32.mrb[0].mxu0
      %1434 = vmatprep.mubr.f32.mxu0 0.0
      %1435 = vmatmul.mubr.f32.gmra.mrb[0].mxu0 %v878
      %v1436 = vpop.f32.mrb[0].mxu0
      %v1437 = vadd.f32 0.0, %v1436
      %v1438 = vpop.f32.mrb[0].mxu0
      %1439 = vdwg.mxu0
      %1440 = vmatprep.subr.mxu0 0.0
      %1441 = vmatpush1.msra.mxu0 %v681
      %1442 = vmatprep.subr.mxu0 0.0
      %1443 = vmatpush1.msra.mxu0 0.0
      %1444 = vmatprep.subr.mxu0 0.0
      %1445 = vmatpush1.msra.mxu0 0.0
      %1446 = vmatprep.subr.mxu0 0.0
      %1447 = vmatpush1.msra.mxu0 0.0
      %1448 = vmatprep.subr.mxu0 0.0
      %1449 = vmatpush1.msra.mxu0 0.0
      %1450 = vmatprep.subr.mxu0 0.0
      %1451 = vmatpush1.msra.mxu0 0.0
      %1452 = vmatprep.subr.mxu0 0.0
      %1453 = vmatpush1.msra.mxu0 0.0
      %1454 = vmatprep.subr.mxu0 0.0
      %1455 = vmatpush1.msra.mxu0 0.0
      %1456 = vmatprep.subr.mxu0 0.0
      %1457 = vmatpush1.msra.mxu0 0.0
      %1458 = vmatprep.subr.mxu0 0.0
      %1459 = vmatpush1.msra.mxu0 0.0
      %1460 = vmatprep.subr.mxu0 0.0
      %1461 = vmatpush1.msra.mxu0 0.0
      %1462 = vmatprep.subr.mxu0 0.0
      %1463 = vmatpush1.msra.mxu0 0.0
      %1464 = vmatprep.subr.mxu0 0.0
      %1465 = vmatpush1.msra.mxu0 0.0
      %1466 = vmatprep.subr.mxu0 0.0
      %1467 = vmatpush1.msra.mxu0 0.0
      %1468 = vmatprep.subr.mxu0 0.0
      %1469 = vmatpush1.msra.mxu0 0.0
      %1470 = vmatprep.subr.mxu0 0.0
      %1471 = vmatpush1.msra.mxu0 0.0
      %1472 = vmatprep.subr.mxu0 0.0
      %1473 = vmatpush1.msra.mxu0 0.0
      %1474 = vmatprep.subr.mxu0 0.0
      %1475 = vmatpush1.msra.mxu0 0.0
      %1476 = vmatprep.subr.mxu0 0.0
      %1477 = vmatpush1.msra.mxu0 0.0
      %1478 = vmatprep.subr.mxu0 0.0
      %1479 = vmatpush1.msra.mxu0 0.0
      %1480 = vmatprep.subr.mxu0 0.0
      %1481 = vmatpush1.msra.mxu0 0.0
      %1482 = vmatprep.subr.mxu0 0.0
      %1483 = vmatpush1.msra.mxu0 0.0
      %1484 = vmatprep.subr.mxu0 0.0
      %1485 = vmatpush1.msra.mxu0 0.0
      %1486 = vmatprep.subr.mxu0 0.0
      %1487 = vmatpush1.msra.mxu0 0.0
      %1488 = vmatprep.subr.mxu0 0.0
      %1489 = vmatpush1.msra.mxu0 0.0
      %1490 = vmatprep.subr.mxu0 0.0
      %1491 = vmatpush1.msra.mxu0 0.0
      %1492 = vmatprep.subr.mxu0 0.0
      %1493 = vmatpush1.msra.mxu0 0.0
      %1494 = vmatprep.subr.mxu0 0.0
      %1495 = vmatpush1.msra.mxu0 0.0
      %1496 = vmatprep.subr.mxu0 0.0
      %1497 = vmatpush1.msra.mxu0 0.0
      %1498 = vmatprep.subr.mxu0 0.0
      %1499 = vmatpush1.msra.mxu0 0.0
      %1500 = vmatprep.subr.mxu0 0.0
      %1501 = vmatpush1.msra.mxu0 0.0
      %1502 = vmatprep.subr.mxu0 0.0
      %1503 = vmatpush1.msra.mxu0 0.0
      %1504 = vmatprep.mubr.f32.mxu0 0.0
      %1505 = vmatmul.mubr.f32.gmra.mrb[0].mxu0 %v872
      %v1506 = vpop.f32.mrb[0].mxu0
      %v1507 = vadd.f32 0.0, %v1506
      %v1508 = vpop.f32.mrb[0].mxu0
      %1509 = vmatprep.mubr.f32.mxu0 0.0
      %1510 = vmatmul.mubr.f32.gmra.mrb[0].mxu0 %v875
      %v1511 = vpop.f32.mrb[0].mxu0
      %v1512 = vadd.f32 0.0, %v1511
      %v1513 = vpop.f32.mrb[0].mxu0
      %1514 = vmatprep.mubr.f32.mxu0 0.0
      %1515 = vmatmul.mubr.f32.gmra.mrb[0].mxu0 %v878
      %v1516 = vpop.f32.mrb[0].mxu0
      %v1517 = vadd.f32 0.0, %v1516
      %v1518 = vpop.f32.mrb[0].mxu0
      %1519 = vdwg.mxu0
      %1520 = vmatprep.subr.mxu0 0.0
      %1521 = vmatpush1.msra.mxu0 %v810
      %1522 = vmatprep.subr.mxu0 0.0
      %1523 = vmatpush1.msra.mxu0 0.0
      %1524 = vmatprep.subr.mxu0 0.0
      %1525 = vmatpush1.msra.mxu0 0.0
      %1526 = vmatprep.subr.mxu0 0.0
      %1527 = vmatpush1.msra.mxu0 0.0
      %1528 = vmatprep.subr.mxu0 0.0
      %1529 = vmatpush1.msra.mxu0 0.0
      %1530 = vmatprep.subr.mxu0 0.0
      %1531 = vmatpush1.msra.mxu0 0.0
      %1532 = vmatprep.subr.mxu0 0.0
      %1533 = vmatpush1.msra.mxu0 0.0
      %1534 = vmatprep.subr.mxu0 0.0
      %1535 = vmatpush1.msra.mxu0 0.0
      %1536 = vmatprep.subr.mxu0 0.0
      %1537 = vmatpush1.msra.mxu0 0.0
      %1538 = vmatprep.subr.mxu0 0.0
      %1539 = vmatpush1.msra.mxu0 0.0
      %1540 = vmatprep.subr.mxu0 0.0
      %1541 = vmatpush1.msra.mxu0 0.0
      %1542 = vmatprep.subr.mxu0 0.0
      %1543 = vmatpush1.msra.mxu0 0.0
      %1544 = vmatprep.subr.mxu0 0.0
      %1545 = vmatpush1.msra.mxu0 0.0
      %1546 = vmatprep.subr.mxu0 0.0
      %1547 = vmatpush1.msra.mxu0 0.0
      %1548 = vmatprep.subr.mxu0 0.0
      %1549 = vmatpush1.msra.mxu0 0.0
      %1550 = vmatprep.subr.mxu0 0.0
      %1551 = vmatpush1.msra.mxu0 0.0
      %1552 = vmatprep.subr.mxu0 0.0
      %1553 = vmatpush1.msra.mxu0 0.0
      %1554 = vmatprep.subr.mxu0 0.0
      %1555 = vmatpush1.msra.mxu0 0.0
      %1556 = vmatprep.subr.mxu0 0.0
      %1557 = vmatpush1.msra.mxu0 0.0
      %1558 = vmatprep.subr.mxu0 0.0
      %1559 = vmatpush1.msra.mxu0 0.0
      %1560 = vmatprep.subr.mxu0 0.0
      %1561 = vmatpush1.msra.mxu0 0.0
      %1562 = vmatprep.subr.mxu0 0.0
      %1563 = vmatpush1.msra.mxu0 0.0
      %1564 = vmatprep.subr.mxu0 0.0
      %1565 = vmatpush1.msra.mxu0 0.0
      %1566 = vmatprep.subr.mxu0 0.0
      %1567 = vmatpush1.msra.mxu0 0.0
      %1568 = vmatprep.subr.mxu0 0.0
      %1569 = vmatpush1.msra.mxu0 0.0
      %1570 = vmatprep.subr.mxu0 0.0
      %1571 = vmatpush1.msra.mxu0 0.0
      %1572 = vmatprep.subr.mxu0 0.0
      %1573 = vmatpush1.msra.mxu0 0.0
      %1574 = vmatprep.subr.mxu0 0.0
      %1575 = vmatpush1.msra.mxu0 0.0
      %1576 = vmatprep.subr.mxu0 0.0
      %1577 = vmatpush1.msra.mxu0 0.0
      %1578 = vmatprep.subr.mxu0 0.0
      %1579 = vmatpush1.msra.mxu0 0.0
      %1580 = vmatprep.subr.mxu0 0.0
      %1581 = vmatpush1.msra.mxu0 0.0
      %1582 = vmatprep.subr.mxu0 0.0
      %1583 = vmatpush1.msra.mxu0 0.0
      %1584 = vmatprep.mubr.f32.mxu0 0.0
      %1585 = vmatmul.mubr.f32.gmra.mrb[0].mxu0 %v872
      %v1586 = vpop.f32.mrb[0].mxu0
      %v1587 = vadd.f32 0.0, %v1586
      %v1588 = vpop.f32.mrb[0].mxu0
      %1589 = vmatprep.mubr.f32.mxu0 0.0
      %1590 = vmatmul.mubr.f32.gmra.mrb[0].mxu0 %v875
      %v1591 = vpop.f32.mrb[0].mxu0
      %v1592 = vadd.f32 0.0, %v1591
      %v1593 = vpop.f32.mrb[0].mxu0
      %1594 = vmatprep.mubr.f32.mxu0 0.0
      %1595 = vmatmul.mubr.f32.gmra.mrb[0].mxu0 %v878
      %v1596 = vpop.f32.mrb[0].mxu0
      %v1597 = vadd.f32 0.0, %v1596
      %v1598 = vpop.f32.mrb[0].mxu0
      %1599 = vdwg.mxu0
      %1600 = vmatprep.subr.mxu0 0.0
      %1601 = vmatpush1.msra.mxu0 %v811
      %1602 = vmatprep.subr.mxu0 0.0
      %1603 = vmatpush1.msra.mxu0 0.0
      %1604 = vmatprep.subr.mxu0 0.0
      %1605 = vmatpush1.msra.mxu0 0.0
      %1606 = vmatprep.subr.mxu0 0.0
      %1607 = vmatpush1.msra.mxu0 0.0
      %1608 = vmatprep.subr.mxu0 0.0
      %1609 = vmatpush1.msra.mxu0 0.0
      %1610 = vmatprep.subr.mxu0 0.0
      %1611 = vmatpush1.msra.mxu0 0.0
      %1612 = vmatprep.subr.mxu0 0.0
      %1613 = vmatpush1.msra.mxu0 0.0
      %1614 = vmatprep.subr.mxu0 0.0
      %1615 = vmatpush1.msra.mxu0 0.0
      %1616 = vmatprep.subr.mxu0 0.0
      %1617 = vmatpush1.msra.mxu0 0.0
      %1618 = vmatprep.subr.mxu0 0.0
      %1619 = vmatpush1.msra.mxu0 0.0
      %1620 = vmatprep.subr.mxu0 0.0
      %1621 = vmatpush1.msra.mxu0 0.0
      %1622 = vmatprep.subr.mxu0 0.0
      %1623 = vmatpush1.msra.mxu0 0.0
      %1624 = vmatprep.subr.mxu0 0.0
      %1625 = vmatpush1.msra.mxu0 0.0
      %1626 = vmatprep.subr.mxu0 0.0
      %1627 = vmatpush1.msra.mxu0 0.0
      %1628 = vmatprep.subr.mxu0 0.0
      %1629 = vmatpush1.msra.mxu0 0.0
      %1630 = vmatprep.subr.mxu0 0.0
      %1631 = vmatpush1.msra.mxu0 0.0
      %1632 = vmatprep.subr.mxu0 0.0
      %1633 = vmatpush1.msra.mxu0 0.0
      %1634 = vmatprep.subr.mxu0 0.0
      %1635 = vmatpush1.msra.mxu0 0.0
      %1636 = vmatprep.subr.mxu0 0.0
      %1637 = vmatpush1.msra.mxu0 0.0
      %1638 = vmatprep.subr.mxu0 0.0
      %1639 = vmatpush1.msra.mxu0 0.0
      %1640 = vmatprep.subr.mxu0 0.0
      %1641 = vmatpush1.msra.mxu0 0.0
      %1642 = vmatprep.subr.mxu0 0.0
      %1643 = vmatpush1.msra.mxu0 0.0
      %1644 = vmatprep.subr.mxu0 0.0
      %1645 = vmatpush1.msra.mxu0 0.0
      %1646 = vmatprep.subr.mxu0 0.0
      %1647 = vmatpush1.msra.mxu0 0.0
      %1648 = vmatprep.subr.mxu0 0.0
      %1649 = vmatpush1.msra.mxu0 0.0
      %1650 = vmatprep.subr.mxu0 0.0
      %1651 = vmatpush1.msra.mxu0 0.0
      %1652 = vmatprep.subr.mxu0 0.0
      %1653 = vmatpush1.msra.mxu0 0.0
      %1654 = vmatprep.subr.mxu0 0.0
      %1655 = vmatpush1.msra.mxu0 0.0
      %1656 = vmatprep.subr.mxu0 0.0
      %1657 = vmatpush1.msra.mxu0 0.0
      %1658 = vmatprep.subr.mxu0 0.0
      %1659 = vmatpush1.msra.mxu0 0.0
      %1660 = vmatprep.subr.mxu0 0.0
      %1661 = vmatpush1.msra.mxu0 0.0
      %1662 = vmatprep.subr.mxu0 0.0
      %1663 = vmatpush1.msra.mxu0 0.0
      %1664 = vmatprep.mubr.f32.mxu0 0.0
      %1665 = vmatmul.mubr.f32.gmra.mrb[0].mxu0 %v872
      %v1666 = vpop.f32.mrb[0].mxu0
      %v1667 = vadd.f32 0.0, %v1666
      %v1668 = vpop.f32.mrb[0].mxu0
      %1669 = vmatprep.mubr.f32.mxu0 0.0
      %1670 = vmatmul.mubr.f32.gmra.mrb[0].mxu0 %v875
      %v1671 = vpop.f32.mrb[0].mxu0
      %v1672 = vadd.f32 0.0, %v1671
      %v1673 = vpop.f32.mrb[0].mxu0
      %1674 = vmatprep.mubr.f32.mxu0 0.0
      %1675 = vmatmul.mubr.f32.gmra.mrb[0].mxu0 %v878
      %v1676 = vpop.f32.mrb[0].mxu0
      %v1677 = vadd.f32 0.0, %v1676
      %v1678 = vpop.f32.mrb[0].mxu0
      %1679 = vdwg.mxu0
      %1680 = vmatprep.subr.mxu0 0.0
      %1681 = vmatpush1.msra.mxu0 %v812
      %1682 = vmatprep.subr.mxu0 0.0
      %1683 = vmatpush1.msra.mxu0 0.0
      %1684 = vmatprep.subr.mxu0 0.0
      %1685 = vmatpush1.msra.mxu0 0.0
      %1686 = vmatprep.subr.mxu0 0.0
      %1687 = vmatpush1.msra.mxu0 0.0
      %1688 = vmatprep.subr.mxu0 0.0
      %1689 = vmatpush1.msra.mxu0 0.0
      %1690 = vmatprep.subr.mxu0 0.0
      %1691 = vmatpush1.msra.mxu0 0.0
      %1692 = vmatprep.subr.mxu0 0.0
      %1693 = vmatpush1.msra.mxu0 0.0
      %1694 = vmatprep.subr.mxu0 0.0
      %1695 = vmatpush1.msra.mxu0 0.0
      %1696 = vmatprep.subr.mxu0 0.0
      %1697 = vmatpush1.msra.mxu0 0.0
      %1698 = vmatprep.subr.mxu0 0.0
      %1699 = vmatpush1.msra.mxu0 0.0
      %1700 = vmatprep.subr.mxu0 0.0
      %1701 = vmatpush1.msra.mxu0 0.0
      %1702 = vmatprep.subr.mxu0 0.0
      %1703 = vmatpush1.msra.mxu0 0.0
      %1704 = vmatprep.subr.mxu0 0.0
      %1705 = vmatpush1.msra.mxu0 0.0
      %1706 = vmatprep.subr.mxu0 0.0
      %1707 = vmatpush1.msra.mxu0 0.0
      %1708 = vmatprep.subr.mxu0 0.0
      %1709 = vmatpush1.msra.mxu0 0.0
      %1710 = vmatprep.subr.mxu0 0.0
      %1711 = vmatpush1.msra.mxu0 0.0
      %1712 = vmatprep.subr.mxu0 0.0
      %1713 = vmatpush1.msra.mxu0 0.0
      %1714 = vmatprep.subr.mxu0 0.0
      %1715 = vmatpush1.msra.mxu0 0.0
      %1716 = vmatprep.subr.mxu0 0.0
      %1717 = vmatpush1.msra.mxu0 0.0
      %1718 = vmatprep.subr.mxu0 0.0
      %1719 = vmatpush1.msra.mxu0 0.0
      %1720 = vmatprep.subr.mxu0 0.0
      %1721 = vmatpush1.msra.mxu0 0.0
      %1722 = vmatprep.subr.mxu0 0.0
      %1723 = vmatpush1.msra.mxu0 0.0
      %1724 = vmatprep.subr.mxu0 0.0
      %1725 = vmatpush1.msra.mxu0 0.0
      %1726 = vmatprep.subr.mxu0 0.0
      %1727 = vmatpush1.msra.mxu0 0.0
      %1728 = vmatprep.subr.mxu0 0.0
      %1729 = vmatpush1.msra.mxu0 0.0
      %1730 = vmatprep.subr.mxu0 0.0
      %1731 = vmatpush1.msra.mxu0 0.0
      %1732 = vmatprep.subr.mxu0 0.0
      %1733 = vmatpush1.msra.mxu0 0.0
      %1734 = vmatprep.subr.mxu0 0.0
      %1735 = vmatpush1.msra.mxu0 0.0
      %1736 = vmatprep.subr.mxu0 0.0
      %1737 = vmatpush1.msra.mxu0 0.0
      %1738 = vmatprep.subr.mxu0 0.0
      %1739 = vmatpush1.msra.mxu0 0.0
      %1740 = vmatprep.subr.mxu0 0.0
      %1741 = vmatpush1.msra.mxu0 0.0
      %1742 = vmatprep.subr.mxu0 0.0
      %1743 = vmatpush1.msra.mxu0 0.0
      %1744 = vmatprep.mubr.f32.mxu0 0.0
      %1745 = vmatmul.mubr.f32.gmra.mrb[0].mxu0 %v872
      %v1746 = vpop.f32.mrb[0].mxu0
      %v1747 = vadd.f32 0.0, %v1746
      %v1748 = vpop.f32.mrb[0].mxu0
      %1749 = vmatprep.mubr.f32.mxu0 0.0
      %1750 = vmatmul.mubr.f32.gmra.mrb[0].mxu0 %v875
      %v1751 = vpop.f32.mrb[0].mxu0
      %v1752 = vadd.f32 0.0, %v1751
      %v1753 = vpop.f32.mrb[0].mxu0
      %1754 = vmatprep.mubr.f32.mxu0 0.0
      %1755 = vmatmul.mubr.f32.gmra.mrb[0].mxu0 %v878
      %v1756 = vpop.f32.mrb[0].mxu0
      %v1757 = vadd.f32 0.0, %v1756
      %v1758 = vpop.f32.mrb[0].mxu0
      %1759 = vdwg.mxu0
      %1760 = vmatprep.subr.mxu0 0.0
      %1761 = vmatpush1.msra.mxu0 %v813
      %1762 = vmatprep.subr.mxu0 0.0
      %1763 = vmatpush1.msra.mxu0 0.0
      %1764 = vmatprep.subr.mxu0 0.0
      %1765 = vmatpush1.msra.mxu0 0.0
      %1766 = vmatprep.subr.mxu0 0.0
      %1767 = vmatpush1.msra.mxu0 0.0
      %1768 = vmatprep.subr.mxu0 0.0
      %1769 = vmatpush1.msra.mxu0 0.0
      %1770 = vmatprep.subr.mxu0 0.0
      %1771 = vmatpush1.msra.mxu0 0.0
      %1772 = vmatprep.subr.mxu0 0.0
      %1773 = vmatpush1.msra.mxu0 0.0
      %1774 = vmatprep.subr.mxu0 0.0
      %1775 = vmatpush1.msra.mxu0 0.0
      %1776 = vmatprep.subr.mxu0 0.0
      %1777 = vmatpush1.msra.mxu0 0.0
      %1778 = vmatprep.subr.mxu0 0.0
      %1779 = vmatpush1.msra.mxu0 0.0
      %1780 = vmatprep.subr.mxu0 0.0
      %1781 = vmatpush1.msra.mxu0 0.0
      %1782 = vmatprep.subr.mxu0 0.0
      %1783 = vmatpush1.msra.mxu0 0.0
      %1784 = vmatprep.subr.mxu0 0.0
      %1785 = vmatpush1.msra.mxu0 0.0
      %1786 = vmatprep.subr.mxu0 0.0
      %1787 = vmatpush1.msra.mxu0 0.0
      %1788 = vmatprep.subr.mxu0 0.0
      %1789 = vmatpush1.msra.mxu0 0.0
      %1790 = vmatprep.subr.mxu0 0.0
      %1791 = vmatpush1.msra.mxu0 0.0
      %1792 = vmatprep.subr.mxu0 0.0
      %1793 = vmatpush1.msra.mxu0 0.0
      %1794 = vmatprep.subr.mxu0 0.0
      %1795 = vmatpush1.msra.mxu0 0.0
      %1796 = vmatprep.subr.mxu0 0.0
      %1797 = vmatpush1.msra.mxu0 0.0
      %1798 = vmatprep.subr.mxu0 0.0
      %1799 = vmatpush1.msra.mxu0 0.0
      %1800 = vmatprep.subr.mxu0 0.0
      %1801 = vmatpush1.msra.mxu0 0.0
      %1802 = vmatprep.subr.mxu0 0.0
      %1803 = vmatpush1.msra.mxu0 0.0
      %1804 = vmatprep.subr.mxu0 0.0
      %1805 = vmatpush1.msra.mxu0 0.0
      %1806 = vmatprep.subr.mxu0 0.0
      %1807 = vmatpush1.msra.mxu0 0.0
      %1808 = vmatprep.subr.mxu0 0.0
      %1809 = vmatpush1.msra.mxu0 0.0
      %1810 = vmatprep.subr.mxu0 0.0
      %1811 = vmatpush1.msra.mxu0 0.0
      %1812 = vmatprep.subr.mxu0 0.0
      %1813 = vmatpush1.msra.mxu0 0.0
      %1814 = vmatprep.subr.mxu0 0.0
      %1815 = vmatpush1.msra.mxu0 0.0
      %1816 = vmatprep.subr.mxu0 0.0
      %1817 = vmatpush1.msra.mxu0 0.0
      %1818 = vmatprep.subr.mxu0 0.0
      %1819 = vmatpush1.msra.mxu0 0.0
      %1820 = vmatprep.subr.mxu0 0.0
      %1821 = vmatpush1.msra.mxu0 0.0
      %1822 = vmatprep.subr.mxu0 0.0
      %1823 = vmatpush1.msra.mxu0 0.0
      %1824 = vmatprep.mubr.f32.mxu0 0.0
      %1825 = vmatmul.mubr.f32.gmra.mrb[0].mxu0 %v872
      %v1826 = vpop.f32.mrb[0].mxu0
      %v1827 = vadd.f32 0.0, %v1826
      %v1828 = vpop.f32.mrb[0].mxu0
      %1829 = vmatprep.mubr.f32.mxu0 0.0
      %1830 = vmatmul.mubr.f32.gmra.mrb[0].mxu0 %v875
      %v1831 = vpop.f32.mrb[0].mxu0
      %v1832 = vadd.f32 0.0, %v1831
      %v1833 = vpop.f32.mrb[0].mxu0
      %1834 = vmatprep.mubr.f32.mxu0 0.0
      %1835 = vmatmul.mubr.f32.gmra.mrb[0].mxu0 %v878
      %v1836 = vpop.f32.mrb[0].mxu0
      %v1837 = vadd.f32 0.0, %v1836
      %v1838 = vpop.f32.mrb[0].mxu0
      %1839 = vdwg.mxu0
      %1840 = vmatprep.subr.mxu0 0.0
      %1841 = vmatpush1.msra.mxu0 %v814
      %1842 = vmatprep.subr.mxu0 0.0
      %1843 = vmatpush1.msra.mxu0 0.0
      %1844 = vmatprep.subr.mxu0 0.0
      %1845 = vmatpush1.msra.mxu0 0.0
      %1846 = vmatprep.subr.mxu0 0.0
      %1847 = vmatpush1.msra.mxu0 0.0
      %1848 = vmatprep.subr.mxu0 0.0
      %1849 = vmatpush1.msra.mxu0 0.0
      %1850 = vmatprep.subr.mxu0 0.0
      %1851 = vmatpush1.msra.mxu0 0.0
      %1852 = vmatprep.subr.mxu0 0.0
      %1853 = vmatpush1.msra.mxu0 0.0
      %1854 = vmatprep.subr.mxu0 0.0
      %1855 = vmatpush1.msra.mxu0 0.0
      %1856 = vmatprep.subr.mxu0 0.0
      %1857 = vmatpush1.msra.mxu0 0.0
      %1858 = vmatprep.subr.mxu0 0.0
      %1859 = vmatpush1.msra.mxu0 0.0
      %1860 = vmatprep.subr.mxu0 0.0
      %1861 = vmatpush1.msra.mxu0 0.0
      %1862 = vmatprep.subr.mxu0 0.0
      %1863 = vmatpush1.msra.mxu0 0.0
      %1864 = vmatprep.subr.mxu0 0.0
      %1865 = vmatpush1.msra.mxu0 0.0
      %1866 = vmatprep.subr.mxu0 0.0
      %1867 = vmatpush1.msra.mxu0 0.0
      %1868 = vmatprep.subr.mxu0 0.0
      %1869 = vmatpush1.msra.mxu0 0.0
      %1870 = vmatprep.subr.mxu0 0.0
      %1871 = vmatpush1.msra.mxu0 0.0
      %1872 = vmatprep.subr.mxu0 0.0
      %1873 = vmatpush1.msra.mxu0 0.0
      %1874 = vmatprep.subr.mxu0 0.0
      %1875 = vmatpush1.msra.mxu0 0.0
      %1876 = vmatprep.subr.mxu0 0.0
      %1877 = vmatpush1.msra.mxu0 0.0
      %1878 = vmatprep.subr.mxu0 0.0
      %1879 = vmatpush1.msra.mxu0 0.0
      %1880 = vmatprep.subr.mxu0 0.0
      %1881 = vmatpush1.msra.mxu0 0.0
      %1882 = vmatprep.subr.mxu0 0.0
      %1883 = vmatpush1.msra.mxu0 0.0
      %1884 = vmatprep.subr.mxu0 0.0
      %1885 = vmatpush1.msra.mxu0 0.0
      %1886 = vmatprep.subr.mxu0 0.0
      %1887 = vmatpush1.msra.mxu0 0.0
      %1888 = vmatprep.subr.mxu0 0.0
      %1889 = vmatpush1.msra.mxu0 0.0
      %1890 = vmatprep.subr.mxu0 0.0
      %1891 = vmatpush1.msra.mxu0 0.0
      %1892 = vmatprep.subr.mxu0 0.0
      %1893 = vmatpush1.msra.mxu0 0.0
      %1894 = vmatprep.subr.mxu0 0.0
      %1895 = vmatpush1.msra.mxu0 0.0
      %1896 = vmatprep.subr.mxu0 0.0
      %1897 = vmatpush1.msra.mxu0 0.0
      %1898 = vmatprep.subr.mxu0 0.0
      %1899 = vmatpush1.msra.mxu0 0.0
      %1900 = vmatprep.subr.mxu0 0.0
      %1901 = vmatpush1.msra.mxu0 0.0
      %1902 = vmatprep.subr.mxu0 0.0
      %1903 = vmatpush1.msra.mxu0 0.0
      %1904 = vmatprep.mubr.f32.mxu0 0.0
      %1905 = vmatmul.mubr.f32.gmra.mrb[0].mxu0 %v872
      %v1906 = vpop.f32.mrb[0].mxu0
      %v1907 = vadd.f32 0.0, %v1906
      %v1908 = vpop.f32.mrb[0].mxu0
      %1909 = vmatprep.mubr.f32.mxu0 0.0
      %1910 = vmatmul.mubr.f32.gmra.mrb[0].mxu0 %v875
      %v1911 = vpop.f32.mrb[0].mxu0
      %v1912 = vadd.f32 0.0, %v1911
      %v1913 = vpop.f32.mrb[0].mxu0
      %1914 = vmatprep.mubr.f32.mxu0 0.0
      %1915 = vmatmul.mubr.f32.gmra.mrb[0].mxu0 %v878
      %v1916 = vpop.f32.mrb[0].mxu0
      %v1917 = vadd.f32 0.0, %v1916
      %v1918 = vpop.f32.mrb[0].mxu0
      %1919 = vdwg.mxu0
      %1920 = vmatprep.subr.mxu0 0.0
      %1921 = vmatpush1.msra.mxu0 %v815
      %1922 = vmatprep.subr.mxu0 0.0
      %1923 = vmatpush1.msra.mxu0 0.0
      %1924 = vmatprep.subr.mxu0 0.0
      %1925 = vmatpush1.msra.mxu0 0.0
      %1926 = vmatprep.subr.mxu0 0.0
      %1927 = vmatpush1.msra.mxu0 0.0
      %1928 = vmatprep.subr.mxu0 0.0
      %1929 = vmatpush1.msra.mxu0 0.0
      %1930 = vmatprep.subr.mxu0 0.0
      %1931 = vmatpush1.msra.mxu0 0.0
      %1932 = vmatprep.subr.mxu0 0.0
      %1933 = vmatpush1.msra.mxu0 0.0
      %1934 = vmatprep.subr.mxu0 0.0
      %1935 = vmatpush1.msra.mxu0 0.0
      %1936 = vmatprep.subr.mxu0 0.0
      %1937 = vmatpush1.msra.mxu0 0.0
      %1938 = vmatprep.subr.mxu0 0.0
      %1939 = vmatpush1.msra.mxu0 0.0
      %1940 = vmatprep.subr.mxu0 0.0
      %1941 = vmatpush1.msra.mxu0 0.0
      %1942 = vmatprep.subr.mxu0 0.0
      %1943 = vmatpush1.msra.mxu0 0.0
      %1944 = vmatprep.subr.mxu0 0.0
      %1945 = vmatpush1.msra.mxu0 0.0
      %1946 = vmatprep.subr.mxu0 0.0
      %1947 = vmatpush1.msra.mxu0 0.0
      %1948 = vmatprep.subr.mxu0 0.0
      %1949 = vmatpush1.msra.mxu0 0.0
      %1950 = vmatprep.subr.mxu0 0.0
      %1951 = vmatpush1.msra.mxu0 0.0
      %1952 = vmatprep.subr.mxu0 0.0
      %1953 = vmatpush1.msra.mxu0 0.0
      %1954 = vmatprep.subr.mxu0 0.0
      %1955 = vmatpush1.msra.mxu0 0.0
      %1956 = vmatprep.subr.mxu0 0.0
      %1957 = vmatpush1.msra.mxu0 0.0
      %1958 = vmatprep.subr.mxu0 0.0
      %1959 = vmatpush1.msra.mxu0 0.0
      %1960 = vmatprep.subr.mxu0 0.0
      %1961 = vmatpush1.msra.mxu0 0.0
      %1962 = vmatprep.subr.mxu0 0.0
      %1963 = vmatpush1.msra.mxu0 0.0
      %1964 = vmatprep.subr.mxu0 0.0
      %1965 = vmatpush1.msra.mxu0 0.0
      %1966 = vmatprep.subr.mxu0 0.0
      %1967 = vmatpush1.msra.mxu0 0.0
      %1968 = vmatprep.subr.mxu0 0.0
      %1969 = vmatpush1.msra.mxu0 0.0
      %1970 = vmatprep.subr.mxu0 0.0
      %1971 = vmatpush1.msra.mxu0 0.0
      %1972 = vmatprep.subr.mxu0 0.0
      %1973 = vmatpush1.msra.mxu0 0.0
      %1974 = vmatprep.subr.mxu0 0.0
      %1975 = vmatpush1.msra.mxu0 0.0
      %1976 = vmatprep.subr.mxu0 0.0
      %1977 = vmatpush1.msra.mxu0 0.0
      %1978 = vmatprep.subr.mxu0 0.0
      %1979 = vmatpush1.msra.mxu0 0.0
      %1980 = vmatprep.subr.mxu0 0.0
      %1981 = vmatpush1.msra.mxu0 0.0
      %1982 = vmatprep.subr.mxu0 0.0
      %1983 = vmatpush1.msra.mxu0 0.0
      %1984 = vmatprep.mubr.f32.mxu0 0.0
      %1985 = vmatmul.mubr.f32.gmra.mrb[0].mxu0 %v872
      %v1986 = vpop.f32.mrb[0].mxu0
      %v1987 = vadd.f32 0.0, %v1986
      %v1988 = vpop.f32.mrb[0].mxu0
      %1989 = vmatprep.mubr.f32.mxu0 0.0
      %1990 = vmatmul.mubr.f32.gmra.mrb[0].mxu0 %v875
      %v1991 = vpop.f32.mrb[0].mxu0
      %v1992 = vadd.f32 0.0, %v1991
      %v1993 = vpop.f32.mrb[0].mxu0
      %1994 = vmatprep.mubr.f32.mxu0 0.0
      %1995 = vmatmul.mubr.f32.gmra.mrb[0].mxu0 %v878
      %v1996 = vpop.f32.mrb[0].mxu0
      %v1997 = vadd.f32 0.0, %v1996
      %v1998 = vpop.f32.mrb[0].mxu0
      %1999 = vdwg.mxu0
      %2000 = vmatprep.subr.mxu0 0.0
      %2001 = vmatpush1.msra.mxu0 %v816
      %2002 = vmatprep.subr.mxu0 0.0
      %2003 = vmatpush1.msra.mxu0 0.0
      %2004 = vmatprep.subr.mxu0 0.0
      %2005 = vmatpush1.msra.mxu0 0.0
      %2006 = vmatprep.subr.mxu0 0.0
      %2007 = vmatpush1.msra.mxu0 0.0
      %2008 = vmatprep.subr.mxu0 0.0
      %2009 = vmatpush1.msra.mxu0 0.0
      %2010 = vmatprep.subr.mxu0 0.0
      %2011 = vmatpush1.msra.mxu0 0.0
      %2012 = vmatprep.subr.mxu0 0.0
      %2013 = vmatpush1.msra.mxu0 0.0
      %2014 = vmatprep.subr.mxu0 0.0
      %2015 = vmatpush1.msra.mxu0 0.0
      %2016 = vmatprep.subr.mxu0 0.0
      %2017 = vmatpush1.msra.mxu0 0.0
      %2018 = vmatprep.subr.mxu0 0.0
      %2019 = vmatpush1.msra.mxu0 0.0
      %2020 = vmatprep.subr.mxu0 0.0
      %2021 = vmatpush1.msra.mxu0 0.0
      %2022 = vmatprep.subr.mxu0 0.0
      %2023 = vmatpush1.msra.mxu0 0.0
      %2024 = vmatprep.subr.mxu0 0.0
      %2025 = vmatpush1.msra.mxu0 0.0
      %2026 = vmatprep.subr.mxu0 0.0
      %2027 = vmatpush1.msra.mxu0 0.0
      %2028 = vmatprep.subr.mxu0 0.0
      %2029 = vmatpush1.msra.mxu0 0.0
      %2030 = vmatprep.subr.mxu0 0.0
      %2031 = vmatpush1.msra.mxu0 0.0
      %2032 = vmatprep.subr.mxu0 0.0
      %2033 = vmatpush1.msra.mxu0 0.0
      %2034 = vmatprep.subr.mxu0 0.0
      %2035 = vmatpush1.msra.mxu0 0.0
      %2036 = vmatprep.subr.mxu0 0.0
      %2037 = vmatpush1.msra.mxu0 0.0
      %2038 = vmatprep.subr.mxu0 0.0
      %2039 = vmatpush1.msra.mxu0 0.0
      %2040 = vmatprep.subr.mxu0 0.0
      %2041 = vmatpush1.msra.mxu0 0.0
      %2042 = vmatprep.subr.mxu0 0.0
      %2043 = vmatpush1.msra.mxu0 0.0
      %2044 = vmatprep.subr.mxu0 0.0
      %2045 = vmatpush1.msra.mxu0 0.0
      %2046 = vmatprep.subr.mxu0 0.0
      %2047 = vmatpush1.msra.mxu0 0.0
      %2048 = vmatprep.subr.mxu0 0.0
      %2049 = vmatpush1.msra.mxu0 0.0
      %2050 = vmatprep.subr.mxu0 0.0
      %2051 = vmatpush1.msra.mxu0 0.0
      %2052 = vmatprep.subr.mxu0 0.0
      %2053 = vmatpush1.msra.mxu0 0.0
      %2054 = vmatprep.subr.mxu0 0.0
      %2055 = vmatpush1.msra.mxu0 0.0
      %2056 = vmatprep.subr.mxu0 0.0
      %2057 = vmatpush1.msra.mxu0 0.0
      %2058 = vmatprep.subr.mxu0 0.0
      %2059 = vmatpush1.msra.mxu0 0.0
      %2060 = vmatprep.subr.mxu0 0.0
      %2061 = vmatpush1.msra.mxu0 0.0
      %2062 = vmatprep.subr.mxu0 0.0
      %2063 = vmatpush1.msra.mxu0 0.0
      %2064 = vmatprep.mubr.f32.mxu0 0.0
      %2065 = vmatmul.mubr.f32.gmra.mrb[0].mxu0 %v872
      %v2066 = vpop.f32.mrb[0].mxu0
      %v2067 = vadd.f32 0.0, %v2066
      %v2068 = vpop.f32.mrb[0].mxu0
      %2069 = vmatprep.mubr.f32.mxu0 0.0
      %2070 = vmatmul.mubr.f32.gmra.mrb[0].mxu0 %v875
      %v2071 = vpop.f32.mrb[0].mxu0
      %v2072 = vadd.f32 0.0, %v2071
      %v2073 = vpop.f32.mrb[0].mxu0
      %2074 = vmatprep.mubr.f32.mxu0 0.0
      %2075 = vmatmul.mubr.f32.gmra.mrb[0].mxu0 %v878
      %v2076 = vpop.f32.mrb[0].mxu0
      %v2077 = vadd.f32 0.0, %v2076
      %v2078 = vpop.f32.mrb[0].mxu0
      %2079 = vdwg.mxu0
      %2080 = vmatprep.subr.mxu0 0.0
      %2081 = vmatpush1.msra.mxu0 %v817
      %2082 = vmatprep.subr.mxu0 0.0
      %2083 = vmatpush1.msra.mxu0 0.0
      %2084 = vmatprep.subr.mxu0 0.0
      %2085 = vmatpush1.msra.mxu0 0.0
      %2086 = vmatprep.subr.mxu0 0.0
      %2087 = vmatpush1.msra.mxu0 0.0
      %2088 = vmatprep.subr.mxu0 0.0
      %2089 = vmatpush1.msra.mxu0 0.0
      %2090 = vmatprep.subr.mxu0 0.0
      %2091 = vmatpush1.msra.mxu0 0.0
      %2092 = vmatprep.subr.mxu0 0.0
      %2093 = vmatpush1.msra.mxu0 0.0
      %2094 = vmatprep.subr.mxu0 0.0
      %2095 = vmatpush1.msra.mxu0 0.0
      %2096 = vmatprep.subr.mxu0 0.0
      %2097 = vmatpush1.msra.mxu0 0.0
      %2098 = vmatprep.subr.mxu0 0.0
      %2099 = vmatpush1.msra.mxu0 0.0
      %2100 = vmatprep.subr.mxu0 0.0
      %2101 = vmatpush1.msra.mxu0 0.0
      %2102 = vmatprep.subr.mxu0 0.0
      %2103 = vmatpush1.msra.mxu0 0.0
      %2104 = vmatprep.subr.mxu0 0.0
      %2105 = vmatpush1.msra.mxu0 0.0
      %2106 = vmatprep.subr.mxu0 0.0
      %2107 = vmatpush1.msra.mxu0 0.0
      %2108 = vmatprep.subr.mxu0 0.0
      %2109 = vmatpush1.msra.mxu0 0.0
      %2110 = vmatprep.subr.mxu0 0.0
      %2111 = vmatpush1.msra.mxu0 0.0
      %2112 = vmatprep.subr.mxu0 0.0
      %2113 = vmatpush1.msra.mxu0 0.0
      %2114 = vmatprep.subr.mxu0 0.0
      %2115 = vmatpush1.msra.mxu0 0.0
      %2116 = vmatprep.subr.mxu0 0.0
      %2117 = vmatpush1.msra.mxu0 0.0
      %2118 = vmatprep.subr.mxu0 0.0
      %2119 = vmatpush1.msra.mxu0 0.0
      %2120 = vmatprep.subr.mxu0 0.0
      %2121 = vmatpush1.msra.mxu0 0.0
      %2122 = vmatprep.subr.mxu0 0.0
      %2123 = vmatpush1.msra.mxu0 0.0
      %2124 = vmatprep.subr.mxu0 0.0
      %2125 = vmatpush1.msra.mxu0 0.0
      %2126 = vmatprep.subr.mxu0 0.0
      %2127 = vmatpush1.msra.mxu0 0.0
      %2128 = vmatprep.subr.mxu0 0.0
      %2129 = vmatpush1.msra.mxu0 0.0
      %2130 = vmatprep.subr.mxu0 0.0
      %2131 = vmatpush1.msra.mxu0 0.0
      %2132 = vmatprep.subr.mxu0 0.0
      %2133 = vmatpush1.msra.mxu0 0.0
      %2134 = vmatprep.subr.mxu0 0.0
      %2135 = vmatpush1.msra.mxu0 0.0
      %2136 = vmatprep.subr.mxu0 0.0
      %2137 = vmatpush1.msra.mxu0 0.0
      %2138 = vmatprep.subr.mxu0 0.0
      %2139 = vmatpush1.msra.mxu0 0.0
      %2140 = vmatprep.subr.mxu0 0.0
      %2141 = vmatpush1.msra.mxu0 0.0
      %2142 = vmatprep.subr.mxu0 0.0
      %2143 = vmatpush1.msra.mxu0 0.0
      %2144 = vmatprep.mubr.f32.mxu0 0.0
      %2145 = vmatmul.mubr.f32.gmra.mrb[0].mxu0 %v872
      %v2146 = vpop.f32.mrb[0].mxu0
      %v2147 = vadd.f32 0.0, %v2146
      %v2148 = vpop.f32.mrb[0].mxu0
      %2149 = vmatprep.mubr.f32.mxu0 0.0
      %2150 = vmatmul.mubr.f32.gmra.mrb[0].mxu0 %v875
      %v2151 = vpop.f32.mrb[0].mxu0
      %v2152 = vadd.f32 0.0, %v2151
      %v2153 = vpop.f32.mrb[0].mxu0
      %2154 = vmatprep.mubr.f32.mxu0 0.0
      %2155 = vmatmul.mubr.f32.gmra.mrb[0].mxu0 %v878
      %v2156 = vpop.f32.mrb[0].mxu0
      %v2157 = vadd.f32 0.0, %v2156
      %v2158 = vpop.f32.mrb[0].mxu0
      %2159 = vdwg.mxu0
      %2160 = vmatprep.subr.mxu0 0.0
      %2161 = vmatpush1.msra.mxu0 %v866
      %2162 = vmatprep.subr.mxu0 0.0
      %2163 = vmatpush1.msra.mxu0 0.0
      %2164 = vmatprep.subr.mxu0 0.0
      %2165 = vmatpush1.msra.mxu0 0.0
      %2166 = vmatprep.subr.mxu0 0.0
      %2167 = vmatpush1.msra.mxu0 0.0
      %2168 = vmatprep.subr.mxu0 0.0
      %2169 = vmatpush1.msra.mxu0 0.0
      %2170 = vmatprep.subr.mxu0 0.0
      %2171 = vmatpush1.msra.mxu0 0.0
      %2172 = vmatprep.subr.mxu0 0.0
      %2173 = vmatpush1.msra.mxu0 0.0
      %2174 = vmatprep.subr.mxu0 0.0
      %2175 = vmatpush1.msra.mxu0 0.0
      %2176 = vmatprep.subr.mxu0 0.0
      %2177 = vmatpush1.msra.mxu0 0.0
      %2178 = vmatprep.subr.mxu0 0.0
      %2179 = vmatpush1.msra.mxu0 0.0
      %2180 = vmatprep.subr.mxu0 0.0
      %2181 = vmatpush1.msra.mxu0 0.0
      %2182 = vmatprep.subr.mxu0 0.0
      %2183 = vmatpush1.msra.mxu0 0.0
      %2184 = vmatprep.subr.mxu0 0.0
      %2185 = vmatpush1.msra.mxu0 0.0
      %2186 = vmatprep.subr.mxu0 0.0
      %2187 = vmatpush1.msra.mxu0 0.0
      %2188 = vmatprep.subr.mxu0 0.0
      %2189 = vmatpush1.msra.mxu0 0.0
      %2190 = vmatprep.subr.mxu0 0.0
      %2191 = vmatpush1.msra.mxu0 0.0
      %2192 = vmatprep.subr.mxu0 0.0
      %2193 = vmatpush1.msra.mxu0 0.0
      %2194 = vmatprep.subr.mxu0 0.0
      %2195 = vmatpush1.msra.mxu0 0.0
      %2196 = vmatprep.subr.mxu0 0.0
      %2197 = vmatpush1.msra.mxu0 0.0
      %2198 = vmatprep.subr.mxu0 0.0
      %2199 = vmatpush1.msra.mxu0 0.0
      %2200 = vmatprep.subr.mxu0 0.0
      %2201 = vmatpush1.msra.mxu0 0.0
      %2202 = vmatprep.subr.mxu0 0.0
      %2203 = vmatpush1.msra.mxu0 0.0
      %2204 = vmatprep.subr.mxu0 0.0
      %2205 = vmatpush1.msra.mxu0 0.0
      %2206 = vmatprep.subr.mxu0 0.0
      %2207 = vmatpush1.msra.mxu0 0.0
      %2208 = vmatprep.subr.mxu0 0.0
      %2209 = vmatpush1.msra.mxu0 0.0
      %2210 = vmatprep.subr.mxu0 0.0
      %2211 = vmatpush1.msra.mxu0 0.0
      %2212 = vmatprep.subr.mxu0 0.0
      %2213 = vmatpush1.msra.mxu0 0.0
      %2214 = vmatprep.subr.mxu0 0.0
      %2215 = vmatpush1.msra.mxu0 0.0
      %2216 = vmatprep.subr.mxu0 0.0
      %2217 = vmatpush1.msra.mxu0 0.0
      %2218 = vmatprep.subr.mxu0 0.0
      %2219 = vmatpush1.msra.mxu0 0.0
      %2220 = vmatprep.subr.mxu0 0.0
      %2221 = vmatpush1.msra.mxu0 0.0
      %2222 = vmatprep.subr.mxu0 0.0
      %2223 = vmatpush1.msra.mxu0 0.0
      %2224 = vmatprep.mubr.f32.mxu0 0.0
      %2225 = vmatmul.mubr.f32.gmra.mrb[0].mxu0 %v872
      %v2226 = vpop.f32.mrb[0].mxu0
      %v2227 = vadd.f32 0.0, %v2226
      %v2228 = vpop.f32.mrb[0].mxu0
      %2229 = vmatprep.mubr.f32.mxu0 0.0
      %2230 = vmatmul.mubr.f32.gmra.mrb[0].mxu0 %v875
      %v2231 = vpop.f32.mrb[0].mxu0
      %v2232 = vadd.f32 0.0, %v2231
      %v2233 = vpop.f32.mrb[0].mxu0
      %2234 = vmatprep.mubr.f32.mxu0 0.0
      %2235 = vmatmul.mubr.f32.gmra.mrb[0].mxu0 %v878
      %v2236 = vpop.f32.mrb[0].mxu0
      %v2237 = vadd.f32 0.0, %v2236
      %v2238 = vpop.f32.mrb[0].mxu0
      %2239 = vdwg.mxu0
      %2240 = vmatprep.subr.mxu0 0.0
      %2241 = vmatpush1.msra.mxu0 %v867
      %2242 = vmatprep.subr.mxu0 0.0
      %2243 = vmatpush1.msra.mxu0 0.0
      %2244 = vmatprep.subr.mxu0 0.0
      %2245 = vmatpush1.msra.mxu0 0.0
      %2246 = vmatprep.subr.mxu0 0.0
      %2247 = vmatpush1.msra.mxu0 0.0
      %2248 = vmatprep.subr.mxu0 0.0
      %2249 = vmatpush1.msra.mxu0 0.0
      %2250 = vmatprep.subr.mxu0 0.0
      %2251 = vmatpush1.msra.mxu0 0.0
      %2252 = vmatprep.subr.mxu0 0.0
      %2253 = vmatpush1.msra.mxu0 0.0
      %2254 = vmatprep.subr.mxu0 0.0
      %2255 = vmatpush1.msra.mxu0 0.0
      %2256 = vmatprep.subr.mxu0 0.0
      %2257 = vmatpush1.msra.mxu0 0.0
      %2258 = vmatprep.subr.mxu0 0.0
      %2259 = vmatpush1.msra.mxu0 0.0
      %2260 = vmatprep.subr.mxu0 0.0
      %2261 = vmatpush1.msra.mxu0 0.0
      %2262 = vmatprep.subr.mxu0 0.0
      %2263 = vmatpush1.msra.mxu0 0.0
      %2264 = vmatprep.subr.mxu0 0.0
      %2265 = vmatpush1.msra.mxu0 0.0
      %2266 = vmatprep.subr.mxu0 0.0
      %2267 = vmatpush1.msra.mxu0 0.0
      %2268 = vmatprep.subr.mxu0 0.0
      %2269 = vmatpush1.msra.mxu0 0.0
      %2270 = vmatprep.subr.mxu0 0.0
      %2271 = vmatpush1.msra.mxu0 0.0
      %2272 = vmatprep.subr.mxu0 0.0
      %2273 = vmatpush1.msra.mxu0 0.0
      %2274 = vmatprep.subr.mxu0 0.0
      %2275 = vmatpush1.msra.mxu0 0.0
      %2276 = vmatprep.subr.mxu0 0.0
      %2277 = vmatpush1.msra.mxu0 0.0
      %2278 = vmatprep.subr.mxu0 0.0
      %2279 = vmatpush1.msra.mxu0 0.0
      %2280 = vmatprep.subr.mxu0 0.0
      %2281 = vmatpush1.msra.mxu0 0.0
      %2282 = vmatprep.subr.mxu0 0.0
      %2283 = vmatpush1.msra.mxu0 0.0
      %2284 = vmatprep.subr.mxu0 0.0
      %2285 = vmatpush1.msra.mxu0 0.0
      %2286 = vmatprep.subr.mxu0 0.0
      %2287 = vmatpush1.msra.mxu0 0.0
      %2288 = vmatprep.subr.mxu0 0.0
      %2289 = vmatpush1.msra.mxu0 0.0
      %2290 = vmatprep.subr.mxu0 0.0
      %2291 = vmatpush1.msra.mxu0 0.0
      %2292 = vmatprep.subr.mxu0 0.0
      %2293 = vmatpush1.msra.mxu0 0.0
      %2294 = vmatprep.subr.mxu0 0.0
      %2295 = vmatpush1.msra.mxu0 0.0
      %2296 = vmatprep.subr.mxu0 0.0
      %2297 = vmatpush1.msra.mxu0 0.0
      %2298 = vmatprep.subr.mxu0 0.0
      %2299 = vmatpush1.msra.mxu0 0.0
      %2300 = vmatprep.subr.mxu0 0.0
      %2301 = vmatpush1.msra.mxu0 0.0
      %2302 = vmatprep.subr.mxu0 0.0
      %2303 = vmatpush1.msra.mxu0 0.0
      %2304 = vmatprep.mubr.f32.mxu0 0.0
      %2305 = vmatmul.mubr.f32.gmra.mrb[0].mxu0 %v872
      %v2306 = vpop.f32.mrb[0].mxu0
      %v2307 = vadd.f32 0.0, %v2306
      %v2308 = vpop.f32.mrb[0].mxu0
      %2309 = vmatprep.mubr.f32.mxu0 0.0
      %2310 = vmatmul.mubr.f32.gmra.mrb[0].mxu0 %v875
      %v2311 = vpop.f32.mrb[0].mxu0
      %v2312 = vadd.f32 0.0, %v2311
      %v2313 = vpop.f32.mrb[0].mxu0
      %2314 = vmatprep.mubr.f32.mxu0 0.0
      %2315 = vmatmul.mubr.f32.gmra.mrb[0].mxu0 %v878
      %v2316 = vpop.f32.mrb[0].mxu0
      %v2317 = vadd.f32 0.0, %v2316
      %v2318 = vpop.f32.mrb[0].mxu0
      %2319 = vdwg.mxu0
      %v2320 = vpack.c.bf16 %v952, %v947
      %v2321 = vpack.c.bf16 %v957, %v957
      %v2322 = vpack.c.bf16 %v1032, %v1027
      %v2323 = vpack.c.bf16 %v1037, %v1037
      %v2324 = vpack.c.bf16 %v1112, %v1107
      %v2325 = vpack.c.bf16 %v1117, %v1117
      %v2326 = vpack.c.bf16 %v1192, %v1187
      %v2327 = vpack.c.bf16 %v1197, %v1197
      %v2328 = vpack.c.bf16 %v1272, %v1267
      %v2329 = vpack.c.bf16 %v1277, %v1277
      %v2330 = vpack.c.bf16 %v1352, %v1347
      %v2331 = vpack.c.bf16 %v1357, %v1357
      %v2332 = vpack.c.bf16 %v1432, %v1427
      %v2333 = vpack.c.bf16 %v1437, %v1437
      %v2334 = vpack.c.bf16 %v1512, %v1507
      %v2335 = vpack.c.bf16 %v1517, %v1517
      %v2336 = vpack.c.bf16 %v1592, %v1587
      %v2337 = vpack.c.bf16 %v1597, %v1597
      %v2338 = vpack.c.bf16 %v1672, %v1667
      %v2339 = vpack.c.bf16 %v1677, %v1677
      %v2340 = vpack.c.bf16 %v1752, %v1747
      %v2341 = vpack.c.bf16 %v1757, %v1757
      %v2342 = vpack.c.bf16 %v1832, %v1827
      %v2343 = vpack.c.bf16 %v1837, %v1837
      %v2344 = vpack.c.bf16 %v1912, %v1907
      %v2345 = vpack.c.bf16 %v1917, %v1917
      %v2346 = vpack.c.bf16 %v1992, %v1987
      %v2347 = vpack.c.bf16 %v1997, %v1997
      %v2348 = vpack.c.bf16 %v2072, %v2067
      %v2349 = vpack.c.bf16 %v2077, %v2077
      %v2350 = vpack.c.bf16 %v2152, %v2147
      %v2351 = vpack.c.bf16 %v2157, %v2157
      %v2352 = vpack.c.bf16 %v2232, %v2227
      %v2353 = vpack.c.bf16 %v2237, %v2237
      %v2354 = vpack.c.bf16 %v2312, %v2307
      %v2355 = vpack.c.bf16 %v2317, %v2317
      %v2392 = vunpack.c.l.b16 %v2320
      %v2393 = vunpack.c.h.b16 %v2320
      %v2394 = vunpack.c.l.b16 %v2321
      %v2395 = vunpack.c.l.b16 %v2322
      %v2396 = vunpack.c.h.b16 %v2322
      %v2397 = vunpack.c.l.b16 %v2323
      %v2398 = vunpack.c.l.b16 %v2324
      %v2399 = vunpack.c.h.b16 %v2324
      %v2400 = vunpack.c.l.b16 %v2325
      %v2401 = vunpack.c.l.b16 %v2326
      %v2402 = vunpack.c.h.b16 %v2326
      %v2403 = vunpack.c.l.b16 %v2327
      %v2404 = vunpack.c.l.b16 %v2328
      %v2405 = vunpack.c.h.b16 %v2328
      %v2406 = vunpack.c.l.b16 %v2329
      %v2407 = vunpack.c.l.b16 %v2330
      %v2408 = vunpack.c.h.b16 %v2330
      %v2409 = vunpack.c.l.b16 %v2331
      %v2410 = vunpack.c.l.b16 %v2332
      %v2411 = vunpack.c.h.b16 %v2332
      %v2412 = vunpack.c.l.b16 %v2333
      %v2413 = vunpack.c.l.b16 %v2334
      %v2414 = vunpack.c.h.b16 %v2334
      %v2415 = vunpack.c.l.b16 %v2335
      %v2416 = vunpack.c.l.b16 %v2336
      %v2417 = vunpack.c.h.b16 %v2336
      %v2418 = vunpack.c.l.b16 %v2337
      %v2419 = vunpack.c.l.b16 %v2338
      %v2420 = vunpack.c.h.b16 %v2338
      %v2421 = vunpack.c.l.b16 %v2339
      %v2422 = vunpack.c.l.b16 %v2340
      %v2423 = vunpack.c.h.b16 %v2340
      %v2424 = vunpack.c.l.b16 %v2341
      %v2425 = vunpack.c.l.b16 %v2342
      %v2426 = vunpack.c.h.b16 %v2342
      %v2427 = vunpack.c.l.b16 %v2343
      %v2428 = vunpack.c.l.b16 %v2344
      %v2429 = vunpack.c.h.b16 %v2344
      %v2430 = vunpack.c.l.b16 %v2345
      %v2431 = vunpack.c.l.b16 %v2346
      %v2432 = vunpack.c.h.b16 %v2346
      %v2433 = vunpack.c.l.b16 %v2347
      %v2434 = vunpack.c.l.b16 %v2348
      %v2435 = vunpack.c.h.b16 %v2348
      %v2436 = vunpack.c.l.b16 %v2349
      %v2437 = vunpack.c.l.b16 %v2350
      %v2438 = vunpack.c.h.b16 %v2350
      %v2439 = vunpack.c.l.b16 %v2351
      %v2440 = vunpack.c.l.b16 %v2352
      %v2441 = vunpack.c.h.b16 %v2352
      %v2442 = vunpack.c.l.b16 %v2353
      %v2443 = vunpack.c.l.b16 %v2354
      %v2444 = vunpack.c.h.b16 %v2354
      %v2445 = vunpack.c.l.b16 %v2355
      %v2446 = vpack.c.b16 %v2392, %v2392
      %v2447 = vpack.c.b16 %v2393, %v2393
      %v2448 = vpack.c.b16 %v2394, %v2394
      %v2449 = vpack.c.b16 %v2395, %v2395
      %v2450 = vpack.c.b16 %v2396, %v2396
      %v2451 = vpack.c.b16 %v2397, %v2397
      %v2452 = vpack.c.b16 %v2398, %v2398
      %v2453 = vpack.c.b16 %v2399, %v2399
      %v2454 = vpack.c.b16 %v2400, %v2400
      %v2455 = vpack.c.b16 %v2401, %v2401
      %v2456 = vpack.c.b16 %v2402, %v2402
      %v2457 = vpack.c.b16 %v2403, %v2403
      %v2458 = vpack.c.b16 %v2404, %v2404
      %v2459 = vpack.c.b16 %v2405, %v2405
      %v2460 = vpack.c.b16 %v2406, %v2406
      %v2461 = vpack.c.b16 %v2407, %v2407
      %v2462 = vpack.c.b16 %v2408, %v2408
      %v2463 = vpack.c.b16 %v2409, %v2409
      %v2464 = vpack.c.b16 %v2410, %v2410
      %v2465 = vpack.c.b16 %v2411, %v2411
      %v2466 = vpack.c.b16 %v2412, %v2412
      %v2467 = vpack.c.b16 %v2413, %v2413
      %v2468 = vpack.c.b16 %v2414, %v2414
      %v2469 = vpack.c.b16 %v2415, %v2415
      %v2470 = vpack.c.b16 %v2416, %v2416
      %v2471 = vpack.c.b16 %v2417, %v2417
      %v2472 = vpack.c.b16 %v2418, %v2418
      %v2473 = vpack.c.b16 %v2419, %v2419
      %v2474 = vpack.c.b16 %v2420, %v2420
      %v2475 = vpack.c.b16 %v2421, %v2421
      %v2476 = vpack.c.b16 %v2422, %v2422
      %v2477 = vpack.c.b16 %v2423, %v2423
      %v2478 = vpack.c.b16 %v2424, %v2424
      %v2479 = vpack.c.b16 %v2425, %v2425
      %v2480 = vpack.c.b16 %v2426, %v2426
      %v2481 = vpack.c.b16 %v2427, %v2427
      %v2482 = vpack.c.b16 %v2428, %v2428
      %v2483 = vpack.c.b16 %v2429, %v2429
      %v2484 = vpack.c.b16 %v2430, %v2430
      %v2485 = vpack.c.b16 %v2431, %v2431
      %v2486 = vpack.c.b16 %v2432, %v2432
      %v2487 = vpack.c.b16 %v2433, %v2433
      %v2488 = vpack.c.b16 %v2434, %v2434
      %v2489 = vpack.c.b16 %v2435, %v2435
      %v2490 = vpack.c.b16 %v2436, %v2436
      %v2491 = vpack.c.b16 %v2437, %v2437
      %v2492 = vpack.c.b16 %v2438, %v2438
      %v2493 = vpack.c.b16 %v2439, %v2439
      %v2494 = vpack.c.b16 %v2440, %v2440
      %v2495 = vpack.c.b16 %v2441, %v2441
      %v2496 = vpack.c.b16 %v2442, %v2442
      %v2497 = vpack.c.b16 %v2443, %v2443
      %v2498 = vpack.c.b16 %v2444, %v2444
      %v2499 = vpack.c.b16 %v2445, %v2445
      %vm2554 = vcmask 27648
      %2555 = vst.msk [vmem:[%s201] sm:$0xf] %vm2554, %v2446
      %2556 = vst.msk [vmem:[%s201 + $0x4] sm:$0xf] %vm2554, %v2447
      %2557 = vst.msk [vmem:[%s201 + $0x8] sm:$0xf] %vm2554, %v2448
      %2558 = vst.msk [vmem:[%s201 + $0xc] sm:$0xf] %vm2554, %v2449
      %2559 = vst.msk [vmem:[%s201 + $0x10] sm:$0xf] %vm2554, %v2450
      %2560 = vst.msk [vmem:[%s201 + $0x14] sm:$0xf] %vm2554, %v2451
      %2561 = vst.msk [vmem:[%s201 + $0x18] sm:$0xf] %vm2554, %v2452
      %2562 = vst.msk [vmem:[%s201 + $0x1c] sm:$0xf] %vm2554, %v2453
      %2563 = vst.msk [vmem:[%s201 + $0x20] sm:$0xf] %vm2554, %v2454
      %2564 = vst.msk [vmem:[%s201 + $0x24] sm:$0xf] %vm2554, %v2455
      %2565 = vst.msk [vmem:[%s201 + $0x28] sm:$0xf] %vm2554, %v2456
      %2566 = vst.msk [vmem:[%s201 + $0x2c] sm:$0xf] %vm2554, %v2457
      %2567 = vst.msk [vmem:[%s201 + $0x30] sm:$0xf] %vm2554, %v2458
      %2568 = vst.msk [vmem:[%s201 + $0x34] sm:$0xf] %vm2554, %v2459
      %2569 = vst.msk [vmem:[%s201 + $0x38] sm:$0xf] %vm2554, %v2460
      %2570 = vst.msk [vmem:[%s201 + $0x3c] sm:$0xf] %vm2554, %v2461
      %2571 = vst.msk [vmem:[%s201 + $0x40] sm:$0xf] %vm2554, %v2462
      %2572 = vst.msk [vmem:[%s201 + $0x44] sm:$0xf] %vm2554, %v2463
      %2573 = vst.msk [vmem:[%s201 + $0x48] sm:$0xf] %vm2554, %v2464
      %2574 = vst.msk [vmem:[%s201 + $0x4c] sm:$0xf] %vm2554, %v2465
      %2575 = vst.msk [vmem:[%s201 + $0x50] sm:$0xf] %vm2554, %v2466
      %2576 = vst.msk [vmem:[%s201 + $0x54] sm:$0xf] %vm2554, %v2467
      %2577 = vst.msk [vmem:[%s201 + $0x58] sm:$0xf] %vm2554, %v2468
      %2578 = vst.msk [vmem:[%s201 + $0x5c] sm:$0xf] %vm2554, %v2469
      %2579 = vst.msk [vmem:[%s201 + $0x60] sm:$0xf] %vm2554, %v2470
      %2580 = vst.msk [vmem:[%s201 + $0x64] sm:$0xf] %vm2554, %v2471
      %2581 = vst.msk [vmem:[%s201 + $0x68] sm:$0xf] %vm2554, %v2472
      %2582 = vst.msk [vmem:[%s201 + $0x6c] sm:$0xf] %vm2554, %v2473
      %2583 = vst.msk [vmem:[%s201 + $0x70] sm:$0xf] %vm2554, %v2474
      %2584 = vst.msk [vmem:[%s201 + $0x74] sm:$0xf] %vm2554, %v2475
      %2585 = vst.msk [vmem:[%s201 + $0x78] sm:$0xf] %vm2554, %v2476
      %2586 = vst.msk [vmem:[%s201 + $0x7c] sm:$0xf] %vm2554, %v2477
      %2587 = vst.msk [vmem:[%s201 + $0x80] sm:$0xf] %vm2554, %v2478
      %2588 = vst.msk [vmem:[%s201 + $0x84] sm:$0xf] %vm2554, %v2479
      %2589 = vst.msk [vmem:[%s201 + $0x88] sm:$0xf] %vm2554, %v2480
      %2590 = vst.msk [vmem:[%s201 + $0x8c] sm:$0xf] %vm2554, %v2481
      %2591 = vst.msk [vmem:[%s201 + $0x90] sm:$0xf] %vm2554, %v2482
      %2592 = vst.msk [vmem:[%s201 + $0x94] sm:$0xf] %vm2554, %v2483
      %2593 = vst.msk [vmem:[%s201 + $0x98] sm:$0xf] %vm2554, %v2484
      %2594 = vst.msk [vmem:[%s201 + $0x9c] sm:$0xf] %vm2554, %v2485
      %2595 = vst.msk [vmem:[%s201 + $0xa0] sm:$0xf] %vm2554, %v2486
      %2596 = vst.msk [vmem:[%s201 + $0xa4] sm:$0xf] %vm2554, %v2487
      %2597 = vst.msk [vmem:[%s201 + $0xa8] sm:$0xf] %vm2554, %v2488
      %2598 = vst.msk [vmem:[%s201 + $0xac] sm:$0xf] %vm2554, %v2489
      %2599 = vst.msk [vmem:[%s201 + $0xb0] sm:$0xf] %vm2554, %v2490
      %2600 = vst.msk [vmem:[%s201 + $0xb4] sm:$0xf] %vm2554, %v2491
      %2601 = vst.msk [vmem:[%s201 + $0xb8] sm:$0xf] %vm2554, %v2492
      %2602 = vst.msk [vmem:[%s201 + $0xbc] sm:$0xf] %vm2554, %v2493
      %2603 = vst.msk [vmem:[%s201 + $0xc0] sm:$0xf] %vm2554, %v2494
      %2604 = vst.msk [vmem:[%s201 + $0xc4] sm:$0xf] %vm2554, %v2495
      %2605 = vst.msk [vmem:[%s201 + $0xc8] sm:$0xf] %vm2554, %v2496
      %2606 = vst.msk [vmem:[%s201 + $0xcc] sm:$0xf] %vm2554, %v2497
      %2607 = vst.msk [vmem:[%s201 + $0xd0] sm:$0xf] %vm2554, %v2498
      %2608 = vst.msk [vmem:[%s201 + $0xd4] sm:$0xf] %vm2554, %v2499
      %p2609 = scmp.lt.s32.totalorder %s18, 1
      %s2610 = scalar_select %p2609, %s18, 1
      %p2611 = scmp.lt.s32.totalorder %s19, 0
      %s2612 = scalar_select %p2611, %s19, 0
      %s2613 = smul.addr %s2610, 54
      %s2614 = sadd.s32 %s2612, %s2613
      %s2615 = smul.addr %s2614, 4
      %s2616 = scalar_lea.vmem %s3, %s2615
      // Predicated region
      $region33: #{tpu_custom_call.1} parent=31 // pred_check
        %p2617 = pneg %p116
      $region34: #{tpu_custom_call.1} parent=31 // pred_check_branch
        %2619 = sbr.rel (%p2617) target = $region36
      $region35: #{tpu_custom_call.1} parent=31 // pred_region
        _
      $region36: #{tpu_custom_call.1} parent=31 // pred_fallthru
        _
    $region32: #{tpu_custom_call.1} parent=5 // pred_fallthru
      _
    %p2620 = scmp.le.s32.totalorder 2, %s9
    // Predicated region
    $region37: #{tpu_custom_call.1} parent=5 // pred_check
      %p2621 = pneg %p2620
    $region38: #{tpu_custom_call.1} parent=5 // pred_check_branch
      %2623 = sbr.rel (%p2621) target = $region40
    $region39: #{tpu_custom_call.1} parent=5 // pred_region
      %s2624 = ssub.s32 %s9, 2
      // Predicated region
      $region41: #{tpu_custom_call.1} parent=39 // pred_check
        %p2625 = pneg %p122
      $region42: #{tpu_custom_call.1} parent=39 // pred_check_branch
        %2627 = sbr.rel (%p2625) target = $region44
      $region43: #{tpu_custom_call.1} parent=39 // pred_region
        %p2628 = scmp.lt.s32.totalorder %s20, 1
        %s2629 = scalar_select %p2628, %s20, 1
        %p2630 = scmp.lt.s32.totalorder %s21, 0
        %s2631 = scalar_select %p2630, %s21, 0
        %s2632 = smul.addr %s2629, 54
        %s2633 = sadd.s32 %s2631, %s2632
        %s2634 = smul.addr %s2633, 4
        %s2635 = scalar_lea.vmem %s3, %s2634
      $region44: #{tpu_custom_call.1} parent=39 // pred_fallthru
        _
    $region40: #{tpu_custom_call.1} parent=5 // pred_fallthru
      _
  $region6: #{tpu_custom_call.1} parent=0 // loop_footer
    %s13 = sadd.s32 1, %s9
  $region7: #{tpu_custom_call.1} parent=0 // loop_footer_branch
    %8 = sbr.rel target = $region3
  $region8: #{tpu_custom_call.1} parent=0 // loop_exit
    _

</llo_original>
